<compile_context>
chip_gen: v6e
topology: v6e:2x2x1
jax: 0.10.0
libtpu: 0.0.40
codegen_flags: <defaults>
</compile_context>

<pallas_src>
import functools

import jax
import jax.numpy as jnp
from jax.experimental import pallas as pl
from jax.experimental.pallas import tpu as pltpu

EPS = 1e-5
HIDDEN = (256, 324, 512, 128)


def _rup(n, m):
    return ((n + m - 1) // m) * m


def _rup128(n):
    return _rup(n, 128)


# ----------------------------------------------------------------------------
# Pallas kernel: fused 5-layer MLP forward (BN already folded into weights).
# Shape-agnostic over the batch tile; all layer widths are multiples of 128.
# ----------------------------------------------------------------------------
def qnetwork2_kernel(x_ref, w1_ref, w2_ref, w3_ref, w4_ref, w5_ref, b_ref, o_ref):
    w_refs = (w1_ref, w2_ref, w3_ref, w4_ref, w5_ref)

    # Static (trace-time) lane offsets of each bias section in the packed buffer.
    offs = []
    off = 0
    for w in w_refs:
        offs.append(off)
        off += _rup128(w.shape[1])

    h = x_ref[...]  # bf16 activations
    n_layers = len(w_refs)
    for i, w_ref in enumerate(w_refs):
        n = w_ref.shape[1]
        b = b_ref[:, offs[i]:offs[i] + n]          # (1, n) f32, broadcasts over batch
        z = jnp.dot(h, w_ref[...], preferred_element_type=jnp.float32) + b
        z = jnp.maximum(z, 0.0)                    # ReLU on every layer (incl. last, per spec)
        if i + 1 < n_layers:
            h = z.astype(jnp.bfloat16)             # one cast per layer, after the ReLU
        else:
            o_ref[...] = z                         # lane-dense (BM, 128) f32 store


# ----------------------------------------------------------------------------
# Parameter construction (deterministic, torch-like defaults).
# ----------------------------------------------------------------------------
def init_torch_like_params(key, state_size, action_size):
    """Linear: U(-1/sqrt(fan_in), +); BatchNorm1d: gamma=1, beta=0, mean=0, var=1."""
    dims = (state_size,) + HIDDEN + (action_size,)
    linears, bns = [], []
    for i in range(5):
        fan_in, fan_out = dims[i], dims[i + 1]
        key, kw, kb = jax.random.split(key, 3)
        bound = 1.0 / (fan_in ** 0.5)
        w = jax.random.uniform(kw, (fan_in, fan_out), jnp.float32, -bound, bound)
        b = jax.random.uniform(kb, (fan_out,), jnp.float32, -bound, bound)
        linears.append((w, b))
        if i < 4:
            bns.append((jnp.ones((fan_out,), jnp.float32),    # gamma
                        jnp.zeros((fan_out,), jnp.float32),   # beta
                        jnp.zeros((fan_out,), jnp.float32),   # running_mean
                        jnp.ones((fan_out,), jnp.float32)))   # running_var
    return linears, bns


def prepare_kernel_params(linears, bns):
    """Fold BN into Linears, zero-pad EVERY layer width (incl. the final
    action_size) to a multiple of 128 lanes, cast weights to bf16 and pack all
    biases into one lane-padded f32 buffer."""
    # 1) Fold BatchNorm (inference running stats) into the preceding Linear.
    folded = []
    for i, (w, b) in enumerate(linears):
        if i < 4:
            g, be, m, v = bns[i]
            scale = g * jax.lax.rsqrt(v + EPS)
            w = w * scale[None, :]
            b = (b - m) * scale + be
        folded.append((w, b))

    # 2) Zero-pad output widths to multiples of 128 (324 -> 384, action_size -> 128).
    #    Zero rows/cols preserve numerics exactly; extra output lanes are sliced off.
    padded = []
    prev_pad = 0
    for w, b in folded:
        out_dim = w.shape[1]
        pad_out = _rup128(out_dim) - out_dim
        if prev_pad:
            w = jnp.pad(w, ((0, prev_pad), (0, 0)))
        if pad_out:
            w = jnp.pad(w, ((0, 0), (0, pad_out)))
            b = jnp.pad(b, (0, pad_out))
        padded.append((w, b))
        prev_pad = pad_out

    # 3) bf16 weights; one packed f32 bias buffer (sections already x128 wide).
    weights = tuple(w.astype(jnp.bfloat16) for w, _ in padded)
    bias_packed = jnp.concatenate([b for _, b in padded])[None, :]  # (1, 1408)
    return weights, bias_packed


# ----------------------------------------------------------------------------
# Wrapper around pallas_call.
# ----------------------------------------------------------------------------
def _pick_bm(B):
    # Bigger tiles amortize the ~0.35us/step grid overhead, but keep >= 2 grid
    # steps when the batch allows so v7x's 2 TensorCores both get work.
    # BM=512 keeps per-step intermediates (~1 MiB f32) far under v5e's 16 MiB
    # scoped-VMEM default, so no vmem_limit override is needed.
    for bm in (512, 256, 128):
        if B >= 2 * bm:
            return bm
    return 128


@functools.partial(jax.jit, static_argnames=("action_size",))
def qnetwork2_forward(x, weights, bias_packed, *, action_size):
    B, S = x.shape
    BM = _pick_bm(B)
    B_pad = _rup(B, BM)
    n_out = int(weights[-1].shape[1])  # 128 (lane-padded final width)

    xb = x.astype(jnp.bfloat16)
    if B_pad != B:
        xb = jnp.pad(xb, ((0, B_pad - B), (0, 0)))  # padded rows discarded below

    operands = (xb,) + tuple(weights) + (bias_packed,)
    out_shape = jax.ShapeDtypeStruct((B_pad, n_out), jnp.float32)

    flops = 2 * B_pad * sum(int(w.shape[0]) * int(w.shape[1]) for w in weights)
    bytes_accessed = (
        xb.size * xb.dtype.itemsize
        + sum(w.size * w.dtype.itemsize for w in weights)
        + bias_packed.size * bias_packed.dtype.itemsize
        + B_pad * n_out * 4
    )
    cost = pl.CostEstimate(flops=flops, transcendentals=0,
                           bytes_accessed=bytes_accessed)

    # Weights / bias use a constant index_map -> DMA'd once, VMEM-resident
    # across all batch tiles. Batch axis is "parallel" for megacore sharding.
    in_specs = [pl.BlockSpec((BM, S), lambda i: (i, 0))]
    for w in weights:
        in_specs.append(pl.BlockSpec(w.shape, lambda i: (0, 0)))
    in_specs.append(pl.BlockSpec(bias_packed.shape, lambda i: (0, 0)))
    out_specs = pl.BlockSpec((BM, n_out), lambda i: (i, 0))

    out = pl.pallas_call(
        qnetwork2_kernel,
        out_shape=out_shape,
        grid=(B_pad // BM,),
        in_specs=in_specs,
        out_specs=out_specs,
        compiler_params=pltpu.CompilerParams(
            dimension_semantics=("parallel",)),
        cost_estimate=cost,
    )(*operands)

    return out[:B, :action_size]


# ----------------------------------------------------------------------------
# Pure-JAX reference (unfolded params, f32) for correctness checking.
# ----------------------------------------------------------------------------
def reference_forward(x, linears, bns):
    h = x
    for i in range(4):
        w, b = linears[i]
        g, be, m, v = bns[i]
        z = h @ w + b
        z = (z - m) * jax.lax.rsqrt(v + EPS) * g + be
        h = jnp.maximum(z, 0.0)
    w, b = linears[4]
    return jnp.maximum(h @ w + b, 0.0)


if __name__ == "__main__":
    state_size, action_size = 16, 4

    key = jax.random.PRNGKey(0)
    kp, kx1, kx2, kx3 = jax.random.split(key, 4)

    linears, bns = init_torch_like_params(kp, state_size, action_size)
    weights, bias_packed = prepare_kernel_params(linears, bns)

    # Small batch: padded to one 128-row tile, single grid step.
    x_small = jax.random.normal(kx1, (2, state_size), jnp.float32)
    out_small = jax.block_until_ready(
        qnetwork2_forward(x_small, weights, bias_packed, action_size=action_size))
    ref_small = reference_forward(x_small, linears, bns)
    assert out_small.shape == (2, action_size)
    assert jnp.allclose(out_small, ref_small, atol=5e-2, rtol=5e-2), \
        "small-batch mismatch vs reference"

    # Multiple-of-128 batch: 2 grid steps (exercises megacore sharding path).
    x_big = jax.random.normal(kx2, (256, state_size), jnp.float32)
    out_big = jax.block_until_ready(
        qnetwork2_forward(x_big, weights, bias_packed, action_size=action_size))
    ref_big = reference_forward(x_big, linears, bns)
    assert out_big.shape == (256, action_size)
    assert jnp.allclose(out_big, ref_big, atol=5e-2, rtol=5e-2), \
        "batched mismatch vs reference"

    # Ragged batch: exercises batch zero-padding + output slicing.
    x_rag = jax.random.normal(kx3, (300, state_size), jnp.float32)
    out_rag = jax.block_until_ready(
        qnetwork2_forward(x_rag, weights, bias_packed, action_size=action_size))
    ref_rag = reference_forward(x_rag, linears, bns)
    assert out_rag.shape == (300, action_size)
    assert jnp.allclose(out_rag, ref_rag, atol=5e-2, rtol=5e-2), \
        "ragged-batch mismatch vs reference"

    print("KERNEL_OK")
</pallas_src>

<mosaic_0001>
module attributes {stable_mosaic.version = 11 : i64} {
  func.func @qnetwork2_kernel(%arg0: i32, %arg1: memref<128x16xbf16, #tpu.memory_space<vmem>>, %arg2: memref<16x256xbf16, #tpu.memory_space<vmem>>, %arg3: memref<256x384xbf16, #tpu.memory_space<vmem>>, %arg4: memref<384x512xbf16, #tpu.memory_space<vmem>>, %arg5: memref<512x128xbf16, #tpu.memory_space<vmem>>, %arg6: memref<128x128xbf16, #tpu.memory_space<vmem>>, %arg7: memref<1x1408xf32, #tpu.memory_space<vmem>>, %arg8: memref<128x128xf32, #tpu.memory_space<vmem>>) attributes {dimension_semantics = [#tpu.dimension_semantics<parallel>], iteration_bounds = array<i64: 1>, scalar_prefetch = 0 : i64, scratch_operands = 0 : i64, tpu.core_type = #tpu.core_type<tc>, window_params = [{transform_indices = @transform_0, window_bounds = array<i64: 128, 16>}, {pipeline_mode = #tpu.pipeline_mode<synchronous>, transform_indices = @transform_1, window_bounds = array<i64: 16, 256>}, {pipeline_mode = #tpu.pipeline_mode<synchronous>, transform_indices = @transform_2, window_bounds = array<i64: 256, 384>}, {pipeline_mode = #tpu.pipeline_mode<synchronous>, transform_indices = @transform_3, window_bounds = array<i64: 384, 512>}, {pipeline_mode = #tpu.pipeline_mode<synchronous>, transform_indices = @transform_4, window_bounds = array<i64: 512, 128>}, {pipeline_mode = #tpu.pipeline_mode<synchronous>, transform_indices = @transform_5, window_bounds = array<i64: 128, 128>}, {pipeline_mode = #tpu.pipeline_mode<synchronous>, transform_indices = @transform_6, window_bounds = array<i64: 1, 1408>}, {transform_indices = @transform_7, window_bounds = array<i64: 128, 128>}]} {
    %c0 = arith.constant 0 : index
    %c0_0 = arith.constant 0 : index
    %0 = vector.load %arg1[%c0, %c0_0] : memref<128x16xbf16, #tpu.memory_space<vmem>>, vector<128x16xbf16>
    %c0_1 = arith.constant 0 : index
    %c0_2 = arith.constant 0 : index
    %1 = vector.load %arg7[%c0_1, %c0_2] : memref<1x1408xf32, #tpu.memory_space<vmem>>, vector<1x256xf32>
    %c0_3 = arith.constant 0 : index
    %c0_4 = arith.constant 0 : index
    %2 = vector.load %arg2[%c0_3, %c0_4] : memref<16x256xbf16, #tpu.memory_space<vmem>>, vector<16x256xbf16>
    %cst = arith.constant dense<0.000000e+00> : vector<128x256xf32>
    %3 = tpu.matmul %0, %2, %cst {dimension_numbers = #tpu.dot_dimension_numbers<[1], [0], [0], [1], [0, 0, 1, 1], [], []>} : vector<128x16xbf16>, vector<16x256xbf16>, vector<128x256xf32> -> vector<128x256xf32>
    %4 = vector.broadcast %1 : vector<1x256xf32> to vector<128x256xf32>
    %5 = arith.addf %3, %4 : vector<128x256xf32>
    %cst_5 = arith.constant 0.000000e+00 : f32
    %6 = vector.broadcast %cst_5 : f32 to vector<128x256xf32>
    %7 = arith.maximumf %5, %6 : vector<128x256xf32>
    %8 = arith.truncf %7 : vector<128x256xf32> to vector<128x256xbf16>
    %c0_6 = arith.constant 0 : index
    %c256 = arith.constant 256 : index
    %9 = vector.load %arg7[%c0_6, %c256] : memref<1x1408xf32, #tpu.memory_space<vmem>>, vector<1x384xf32>
    %c0_7 = arith.constant 0 : index
    %c0_8 = arith.constant 0 : index
    %10 = vector.load %arg3[%c0_7, %c0_8] : memref<256x384xbf16, #tpu.memory_space<vmem>>, vector<256x384xbf16>
    %cst_9 = arith.constant dense<0.000000e+00> : vector<128x384xf32>
    %11 = tpu.matmul %8, %10, %cst_9 {dimension_numbers = #tpu.dot_dimension_numbers<[1], [0], [0], [1], [0, 0, 1, 1], [], []>} : vector<128x256xbf16>, vector<256x384xbf16>, vector<128x384xf32> -> vector<128x384xf32>
    %12 = vector.broadcast %9 : vector<1x384xf32> to vector<128x384xf32>
    %13 = arith.addf %11, %12 : vector<128x384xf32>
    %cst_10 = arith.constant 0.000000e+00 : f32
    %14 = vector.broadcast %cst_10 : f32 to vector<128x384xf32>
    %15 = arith.maximumf %13, %14 : vector<128x384xf32>
    %16 = arith.truncf %15 : vector<128x384xf32> to vector<128x384xbf16>
    %c0_11 = arith.constant 0 : index
    %c640 = arith.constant 640 : index
    %17 = vector.load %arg7[%c0_11, %c640] : memref<1x1408xf32, #tpu.memory_space<vmem>>, vector<1x512xf32>
    %c0_12 = arith.constant 0 : index
    %c0_13 = arith.constant 0 : index
    %18 = vector.load %arg4[%c0_12, %c0_13] : memref<384x512xbf16, #tpu.memory_space<vmem>>, vector<384x512xbf16>
    %cst_14 = arith.constant dense<0.000000e+00> : vector<128x512xf32>
    %19 = tpu.matmul %16, %18, %cst_14 {dimension_numbers = #tpu.dot_dimension_numbers<[1], [0], [0], [1], [0, 0, 1, 1], [], []>} : vector<128x384xbf16>, vector<384x512xbf16>, vector<128x512xf32> -> vector<128x512xf32>
    %20 = vector.broadcast %17 : vector<1x512xf32> to vector<128x512xf32>
    %21 = arith.addf %19, %20 : vector<128x512xf32>
    %cst_15 = arith.constant 0.000000e+00 : f32
    %22 = vector.broadcast %cst_15 : f32 to vector<128x512xf32>
    %23 = arith.maximumf %21, %22 : vector<128x512xf32>
    %24 = arith.truncf %23 : vector<128x512xf32> to vector<128x512xbf16>
    %c0_16 = arith.constant 0 : index
    %c1152 = arith.constant 1152 : index
    %25 = vector.load %arg7[%c0_16, %c1152] : memref<1x1408xf32, #tpu.memory_space<vmem>>, vector<1x128xf32>
    %c0_17 = arith.constant 0 : index
    %c0_18 = arith.constant 0 : index
    %26 = vector.load %arg5[%c0_17, %c0_18] : memref<512x128xbf16, #tpu.memory_space<vmem>>, vector<512x128xbf16>
    %cst_19 = arith.constant dense<0.000000e+00> : vector<128x128xf32>
    %27 = tpu.matmul %24, %26, %cst_19 {dimension_numbers = #tpu.dot_dimension_numbers<[1], [0], [0], [1], [0, 0, 1, 1], [], []>} : vector<128x512xbf16>, vector<512x128xbf16>, vector<128x128xf32> -> vector<128x128xf32>
    %28 = vector.broadcast %25 : vector<1x128xf32> to vector<128x128xf32>
    %29 = arith.addf %27, %28 : vector<128x128xf32>
    %cst_20 = arith.constant 0.000000e+00 : f32
    %30 = vector.broadcast %cst_20 : f32 to vector<128x128xf32>
    %31 = arith.maximumf %29, %30 : vector<128x128xf32>
    %32 = arith.truncf %31 : vector<128x128xf32> to vector<128x128xbf16>
    %c0_21 = arith.constant 0 : index
    %c1280 = arith.constant 1280 : index
    %33 = vector.load %arg7[%c0_21, %c1280] : memref<1x1408xf32, #tpu.memory_space<vmem>>, vector<1x128xf32>
    %c0_22 = arith.constant 0 : index
    %c0_23 = arith.constant 0 : index
    %34 = vector.load %arg6[%c0_22, %c0_23] : memref<128x128xbf16, #tpu.memory_space<vmem>>, vector<128x128xbf16>
    %cst_24 = arith.constant dense<0.000000e+00> : vector<128x128xf32>
    %35 = tpu.matmul %32, %34, %cst_24 {dimension_numbers = #tpu.dot_dimension_numbers<[1], [0], [0], [1], [0, 0, 1, 1], [], []>} : vector<128x128xbf16>, vector<128x128xbf16>, vector<128x128xf32> -> vector<128x128xf32>
    %36 = vector.broadcast %33 : vector<1x128xf32> to vector<128x128xf32>
    %37 = arith.addf %35, %36 : vector<128x128xf32>
    %cst_25 = arith.constant 0.000000e+00 : f32
    %38 = vector.broadcast %cst_25 : f32 to vector<128x128xf32>
    %39 = arith.maximumf %37, %38 : vector<128x128xf32>
    %c0_26 = arith.constant 0 : index
    %c0_27 = arith.constant 0 : index
    %40 = vector.load %arg8[%c0_26, %c0_27] : memref<128x128xf32, #tpu.memory_space<vmem>>, vector<128x128xf32>
    tpu.vector_store %arg8[%c0_26, %c0_27], %39 {strides = array<i32>} : memref<128x128xf32, #tpu.memory_space<vmem>>, vector<128x128xf32>,
    return
  }
  func.func @transform_0(%arg0: i32) -> (i32, i32) {
    %c0_i32 = arith.constant 0 : i32
    %c0_i32_0 = arith.constant 0 : i32
    return %arg0, %c0_i32 : i32, i32
  }
  func.func @transform_1(%arg0: i32) -> (i32, i32) {
    %c0_i32 = arith.constant 0 : i32
    %c0_i32_0 = arith.constant 0 : i32
    %c0_i32_1 = arith.constant 0 : i32
    return %c0_i32, %c0_i32_0 : i32, i32
  }
  func.func @transform_2(%arg0: i32) -> (i32, i32) {
    %c0_i32 = arith.constant 0 : i32
    %c0_i32_0 = arith.constant 0 : i32
    %c0_i32_1 = arith.constant 0 : i32
    return %c0_i32, %c0_i32_0 : i32, i32
  }
  func.func @transform_3(%arg0: i32) -> (i32, i32) {
    %c0_i32 = arith.constant 0 : i32
    %c0_i32_0 = arith.constant 0 : i32
    %c0_i32_1 = arith.constant 0 : i32
    return %c0_i32, %c0_i32_0 : i32, i32
  }
  func.func @transform_4(%arg0: i32) -> (i32, i32) {
    %c0_i32 = arith.constant 0 : i32
    %c0_i32_0 = arith.constant 0 : i32
    %c0_i32_1 = arith.constant 0 : i32
    return %c0_i32, %c0_i32_0 : i32, i32
  }
  func.func @transform_5(%arg0: i32) -> (i32, i32) {
    %c0_i32 = arith.constant 0 : i32
    %c0_i32_0 = arith.constant 0 : i32
    %c0_i32_1 = arith.constant 0 : i32
    return %c0_i32, %c0_i32_0 : i32, i32
  }
  func.func @transform_6(%arg0: i32) -> (i32, i32) {
    %c0_i32 = arith.constant 0 : i32
    %c0_i32_0 = arith.constant 0 : i32
    %c0_i32_1 = arith.constant 0 : i32
    return %c0_i32, %c0_i32_0 : i32, i32
  }
  func.func @transform_7(%arg0: i32) -> (i32, i32) {
    %c0_i32 = arith.constant 0 : i32
    %c0_i32_0 = arith.constant 0 : i32
    return %arg0, %c0_i32 : i32, i32
  }
}

</mosaic_0001>

<llo_original>
// kernel: qnetwork2_forward.1
$region0: #{qnetwork2_forward.1}
  #allocation0 [shape = 'u32[]', space=smem, size = 0x4, offset = 0x4, fixed_abs, tag = 'smem constant byte address 0x4 - core index']
  #allocation1 [shape = 'u32[144,128]{1,0:T(1,128)}', space=vmem, size = 0x12000, scoped, tag = 'internal scratch']
  %s0 = inlined_call_operand.vmem [shape: bf16[128,16], index: 0, kind: input, shape index: {}]
  %s1 = inlined_call_operand.hbm [shape: bf16[16,256], index: 1, kind: input, shape index: {}]
  %s2 = inlined_call_operand.hbm [shape: bf16[256,384], index: 2, kind: input, shape index: {}]
  %s3 = inlined_call_operand.hbm [shape: bf16[384,512], index: 3, kind: input, shape index: {}]
  %s4 = inlined_call_operand.hbm [shape: bf16[512,128], index: 4, kind: input, shape index: {}]
  %s5 = inlined_call_operand.vmem [shape: bf16[128,128], index: 5, kind: input, shape index: {}]
  %s6 = inlined_call_operand.vmem [shape: f32[1,1408], index: 6, kind: input, shape index: {}]
  %s7 = inlined_call_operand.vmem [shape: f32[128,128], index: 7, kind: output, shape index: {}]
  %s8 = sld [smem:[#allocation0]]
  $region54: #{qnetwork2_forward.1} parent=0
    _
  %s10 = ssub.s32 1, %s8
  %s11 = scalar_select 0, %s10, %s8
  $region1: #{qnetwork2_forward.1} parent=0
    #allocation2 [shape = 'u8[8192]{0}', space=vmem, size = 0x2000, scoped, tag = 'input window, operand 1, single buffered']
    #allocation3 [shape = 's32[1]{0}', space=sflag, size = 0x4, scoped, tag = 'scoped memory for qnetwork2_forward.1']
    #allocation4 [shape = 'u8[196608]{0}', space=vmem, size = 0x30000, scoped, tag = 'input window, operand 2, single buffered']
    #allocation5 [shape = 's32[1]{0}', space=sflag, size = 0x4, scoped, tag = 'scoped memory for qnetwork2_forward.1']
    #allocation6 [shape = 'u8[393216]{0}', space=vmem, size = 0x60000, scoped, tag = 'input window, operand 3, single buffered']
    #allocation7 [shape = 'u8[131072]{0}', space=vmem, size = 0x20000, scoped, tag = 'input window, operand 4, single buffered']
    #allocation8 [shape = 's32[1]{0}', space=sflag, size = 0x4, scoped, tag = 'scoped memory for qnetwork2_forward.1']
    %12 = vsyncpa [#allocation3], 0
    %13 = vsyncpa [#allocation5], 0
    %14 = vsyncpa [#allocation8], 0
    // Predicated region
    $region2: #{qnetwork2_forward.1} parent=1 // pred_check
      _
    $region3: #{qnetwork2_forward.1} parent=1 // pred_check_branch
      %16 = sbr.rel (0) target = $region5
    $region4: #{qnetwork2_forward.1} parent=1 // pred_region
      _
    $region5: #{qnetwork2_forward.1} parent=1 // pred_fallthru
      _
    // Predicated region
    $region6: #{qnetwork2_forward.1} parent=1 // pred_check
      _
    $region7: #{qnetwork2_forward.1} parent=1 // pred_check_branch
      %18 = sbr.rel (0) target = $region9
    $region8: #{qnetwork2_forward.1} parent=1 // pred_region
      %s20 = ssub.s32 256, 256
      %21 = vsyncadd [#allocation3], %s20
      %s22 = sshll.u32 [#allocation2], 4
      %s23 = int_to_ptr.vmem [resolvable:$true] %s22
      %28 = dma.hbm_to_vmem [thread:$0]  %s1, 256, %s23, [#allocation3], 128, 128, 8
    $region9: #{qnetwork2_forward.1} parent=1 // pred_fallthru
      _
    // Predicated region
    $region10: #{qnetwork2_forward.1} parent=1 // pred_check
      _
    $region11: #{qnetwork2_forward.1} parent=1 // pred_check_branch
      %30 = sbr.rel (0) target = $region13
    $region12: #{qnetwork2_forward.1} parent=1 // pred_region
      %s32 = ssub.s32 6144, 6144
      %33 = vsyncadd [#allocation5], %s32
      %s34 = sshll.u32 [#allocation4], 4
      %s35 = int_to_ptr.vmem [resolvable:$true] %s34
      %40 = dma.hbm_to_vmem [thread:$0]  %s2, 6144, %s35, [#allocation5], 192, 192, 12
    $region13: #{qnetwork2_forward.1} parent=1 // pred_fallthru
      _
    // Predicated region
    $region14: #{qnetwork2_forward.1} parent=1 // pred_check
      _
    $region15: #{qnetwork2_forward.1} parent=1 // pred_check_branch
      %42 = sbr.rel (0) target = $region17
    $region16: #{qnetwork2_forward.1} parent=1 // pred_region
      %s44 = ssub.s32 12288, 12288
      %45 = vsyncadd [#allocation5], %s44
      %s46 = sshll.u32 [#allocation6], 4
      %s47 = int_to_ptr.vmem [resolvable:$true] %s46
      %52 = dma.hbm_to_vmem [thread:$0]  %s3, 12288, %s47, [#allocation5], 256, 256, 16
    $region17: #{qnetwork2_forward.1} parent=1 // pred_fallthru
      _
    // Predicated region
    $region18: #{qnetwork2_forward.1} parent=1 // pred_check
      _
    $region19: #{qnetwork2_forward.1} parent=1 // pred_check_branch
      %54 = sbr.rel (0) target = $region21
    $region20: #{qnetwork2_forward.1} parent=1 // pred_region
      %s56 = ssub.s32 4096, 4096
      %57 = vsyncadd [#allocation8], %s56
      %s58 = sshll.u32 [#allocation7], 4
      %s59 = int_to_ptr.vmem [resolvable:$true] %s58
      %64 = dma.hbm_to_vmem [thread:$0]  %s4, 4096, %s59, [#allocation8], 64, 64, 4
    $region21: #{qnetwork2_forward.1} parent=1 // pred_fallthru
      _
    // Predicated region
    $region22: #{qnetwork2_forward.1} parent=1 // pred_check
      _
    $region23: #{qnetwork2_forward.1} parent=1 // pred_check_branch
      %66 = sbr.rel (0) target = $region25
    $region24: #{qnetwork2_forward.1} parent=1 // pred_region
      _
    $region25: #{qnetwork2_forward.1} parent=1 // pred_fallthru
      _
    // Predicated region
    $region26: #{qnetwork2_forward.1} parent=1 // pred_check
      _
    $region27: #{qnetwork2_forward.1} parent=1 // pred_check_branch
      %68 = sbr.rel (0) target = $region29
    $region28: #{qnetwork2_forward.1} parent=1 // pred_region
      _
    $region29: #{qnetwork2_forward.1} parent=1 // pred_fallthru
      _
    // Predicated region
    $region30: #{qnetwork2_forward.1} parent=1 // pred_check
      _
    $region31: #{qnetwork2_forward.1} parent=1 // pred_check_branch
      %70 = sbr.rel (0) target = $region33
    $region32: #{qnetwork2_forward.1} parent=1 // pred_region
      %71 = dma.done [#allocation3], 256
    $region33: #{qnetwork2_forward.1} parent=1 // pred_fallthru
      _
    // Predicated region
    $region34: #{qnetwork2_forward.1} parent=1 // pred_check
      _
    $region35: #{qnetwork2_forward.1} parent=1 // pred_check_branch
      %73 = sbr.rel (0) target = $region37
    $region36: #{qnetwork2_forward.1} parent=1 // pred_region
      %74 = dma.done [#allocation5], 6144
    $region37: #{qnetwork2_forward.1} parent=1 // pred_fallthru
      _
    // Predicated region
    $region38: #{qnetwork2_forward.1} parent=1 // pred_check
      _
    $region39: #{qnetwork2_forward.1} parent=1 // pred_check_branch
      %76 = sbr.rel (0) target = $region41
    $region40: #{qnetwork2_forward.1} parent=1 // pred_region
      %77 = dma.done [#allocation5], 12288
    $region41: #{qnetwork2_forward.1} parent=1 // pred_fallthru
      _
    // Predicated region
    $region42: #{qnetwork2_forward.1} parent=1 // pred_check
      _
    $region43: #{qnetwork2_forward.1} parent=1 // pred_check_branch
      %79 = sbr.rel (0) target = $region45
    $region44: #{qnetwork2_forward.1} parent=1 // pred_region
      %80 = dma.done [#allocation8], 4096
    $region45: #{qnetwork2_forward.1} parent=1 // pred_fallthru
      _
    %v82 = vld [vmem:[%s0] sm:$0xf]
    %v83 = vld [vmem:[%s0 + $0x4] sm:$0xf]
    %v84 = vld [vmem:[%s0 + $0x8] sm:$0xf]
    %v85 = vld [vmem:[%s0 + $0xc] sm:$0xf]
    %v86 = vld [vmem:[%s0 + $0x10] sm:$0xf]
    %v87 = vld [vmem:[%s0 + $0x14] sm:$0xf]
    %v88 = vld [vmem:[%s0 + $0x18] sm:$0xf]
    %v89 = vld [vmem:[%s0 + $0x1c] sm:$0xf]
    %v90 = vld [vmem:[%s0 + $0x20] sm:$0xf]
    %v91 = vld [vmem:[%s0 + $0x24] sm:$0xf]
    %v92 = vld [vmem:[%s0 + $0x28] sm:$0xf]
    %v93 = vld [vmem:[%s0 + $0x2c] sm:$0xf]
    %v94 = vld [vmem:[%s0 + $0x30] sm:$0xf]
    %v95 = vld [vmem:[%s0 + $0x34] sm:$0xf]
    %v96 = vld [vmem:[%s0 + $0x38] sm:$0xf]
    %v97 = vld [vmem:[%s0 + $0x3c] sm:$0xf]
    %v98 = vld [vmem:[%s6] sm:$0x3]
    %v99 = vld [vmem:[#allocation2] sm:$0xff]
    %v100 = vld [vmem:[#allocation2 + $0x8] sm:$0xff]
    %v102 = vlaneseq
    %v103 = vshrl.u32 %v102, 7
    %v104 = vsub.s32 0, %v103
    %v105 = vrot.slane %v98, %v104
    %v106 = vlaneseq
    %v107 = vshrl.u32 %v106, 7
    %v108 = vsub.s32 1, %v107
    %v109 = vrot.slane %v98, %v108
    %v128 = vunpack.c.l.b16 %v82
    %v129 = vunpack.c.l.b16 %v83
    %v130 = vunpack.c.l.b16 %v84
    %v131 = vunpack.c.l.b16 %v85
    %v132 = vunpack.c.l.b16 %v86
    %v133 = vunpack.c.l.b16 %v87
    %v134 = vunpack.c.l.b16 %v88
    %v135 = vunpack.c.l.b16 %v89
    %v136 = vunpack.c.l.b16 %v90
    %v137 = vunpack.c.l.b16 %v91
    %v138 = vunpack.c.l.b16 %v92
    %v139 = vunpack.c.l.b16 %v93
    %v140 = vunpack.c.l.b16 %v94
    %v141 = vunpack.c.l.b16 %v95
    %v142 = vunpack.c.l.b16 %v96
    %v143 = vunpack.c.l.b16 %v97
    %v144 = vpack.c.b16 %v129, %v128
    %v145 = vpack.c.b16 %v131, %v130
    %v146 = vpack.c.b16 %v133, %v132
    %v147 = vpack.c.b16 %v135, %v134
    %v148 = vpack.c.b16 %v137, %v136
    %v149 = vpack.c.b16 %v139, %v138
    %v150 = vpack.c.b16 %v141, %v140
    %v151 = vpack.c.b16 %v143, %v142
    %v154 = vunpack.c.l.b16 %v99
    %v155 = vunpack.c.h.b16 %v99
    %v156 = vunpack.c.l.b16 %v100
    %v157 = vunpack.c.h.b16 %v100
    %v158 = vpack.c.b16 %v156, %v154
    %v159 = vpack.c.b16 %v157, %v155
    %vm162 = vcmask 130048
    %v164 = vsel %vm162, %v144, 0
    %v167 = vsel %vm162, %v145, 0
    %v170 = vsel %vm162, %v146, 0
    %v173 = vsel %vm162, %v147, 0
    %v176 = vsel %vm162, %v148, 0
    %v179 = vsel %vm162, %v149, 0
    %v182 = vsel %vm162, %v150, 0
    %v185 = vsel %vm162, %v151, 0
    %187 = vmatprep.subr.bf16.mxu0 0
    %188 = vmatpush1.bf16.msra.mxu0 0
    %189 = vmatprep.subr.bf16.mxu0 0
    %190 = vmatpush1.bf16.msra.mxu0 0
    %191 = vmatprep.subr.bf16.mxu0 0
    %192 = vmatpush1.bf16.msra.mxu0 0
    %193 = vmatprep.subr.bf16.mxu0 0
    %194 = vmatpush1.bf16.msra.mxu0 0
    %195 = vmatprep.subr.bf16.mxu0 0
    %196 = vmatpush1.bf16.msra.mxu0 0
    %197 = vmatprep.subr.bf16.mxu0 0
    %198 = vmatpush1.bf16.msra.mxu0 0
    %199 = vmatprep.subr.bf16.mxu0 0
    %200 = vmatpush1.bf16.msra.mxu0 0
    %201 = vmatprep.subr.bf16.mxu0 %v159
    %202 = vmatpush1.bf16.msra.mxu0 %v158
    %203 = vmatprep.subr.bf16.mxu0 0
    %204 = vmatpush2.bf16.msra.mxu0 0
    %205 = vmatprep.subr.bf16.mxu0 0
    %206 = vmatpush2.bf16.msra.mxu0 0
    %207 = vmatprep.subr.bf16.mxu0 0
    %208 = vmatpush2.bf16.msra.mxu0 0
    %209 = vmatprep.subr.bf16.mxu0 0
    %210 = vmatpush2.bf16.msra.mxu0 0
    %211 = vmatprep.subr.bf16.mxu0 0
    %212 = vmatpush2.bf16.msra.mxu0 0
    %213 = vmatprep.subr.bf16.mxu0 0
    %214 = vmatpush2.bf16.msra.mxu0 0
    %215 = vmatprep.subr.bf16.mxu0 0
    %216 = vmatpush2.bf16.msra.mxu0 0
    %217 = vmatprep.subr.bf16.mxu0 0
    %218 = vmatpush2.bf16.msra.mxu0 0
    %219 = vmatprep.mubr.bf16.mxu0 0
    %220 = vmatmul.mubr.bf16.gmra.mxu0 %v164
    %v221 = vpop.f32.mrf.mxu0
    %v222 = vadd.f32 %v105, %v221
    %v223 = vpop.f32.mrf.mxu0
    %v224 = vadd.f32 %v109, %v223
    %v225 = vpop.f32.mrf.mxu0
    %v226 = vadd.f32 %v105, %v225
    %v227 = vpop.f32.mrf.mxu0
    %v228 = vadd.f32 %v109, %v227
    %229 = vmatprep.mubr.bf16.mxu0 0
    %230 = vmatmul.mubr.bf16.gmra.mxu0 %v167
    %v231 = vpop.f32.mrf.mxu0
    %v232 = vadd.f32 %v105, %v231
    %v233 = vpop.f32.mrf.mxu0
    %v234 = vadd.f32 %v109, %v233
    %v235 = vpop.f32.mrf.mxu0
    %v236 = vadd.f32 %v105, %v235
    %v237 = vpop.f32.mrf.mxu0
    %v238 = vadd.f32 %v109, %v237
    %239 = vmatprep.mubr.bf16.mxu0 0
    %240 = vmatmul.mubr.bf16.gmra.mxu0 %v170
    %v241 = vpop.f32.mrf.mxu0
    %v242 = vadd.f32 %v105, %v241
    %v243 = vpop.f32.mrf.mxu0
    %v244 = vadd.f32 %v109, %v243
    %v245 = vpop.f32.mrf.mxu0
    %v246 = vadd.f32 %v105, %v245
    %v247 = vpop.f32.mrf.mxu0
    %v248 = vadd.f32 %v109, %v247
    %249 = vmatprep.mubr.bf16.mxu0 0
    %250 = vmatmul.mubr.bf16.gmra.mxu0 %v173
    %v251 = vpop.f32.mrf.mxu0
    %v252 = vadd.f32 %v105, %v251
    %v253 = vpop.f32.mrf.mxu0
    %v254 = vadd.f32 %v109, %v253
    %v255 = vpop.f32.mrf.mxu0
    %v256 = vadd.f32 %v105, %v255
    %v257 = vpop.f32.mrf.mxu0
    %v258 = vadd.f32 %v109, %v257
    %259 = vmatprep.mubr.bf16.mxu0 0
    %260 = vmatmul.mubr.bf16.gmra.mxu0 %v176
    %v261 = vpop.f32.mrf.mxu0
    %v262 = vadd.f32 %v105, %v261
    %v263 = vpop.f32.mrf.mxu0
    %v264 = vadd.f32 %v109, %v263
    %v265 = vpop.f32.mrf.mxu0
    %v266 = vadd.f32 %v105, %v265
    %v267 = vpop.f32.mrf.mxu0
    %v268 = vadd.f32 %v109, %v267
    %269 = vmatprep.mubr.bf16.mxu0 0
    %270 = vmatmul.mubr.bf16.gmra.mxu0 %v179
    %v271 = vpop.f32.mrf.mxu0
    %v272 = vadd.f32 %v105, %v271
    %v273 = vpop.f32.mrf.mxu0
    %v274 = vadd.f32 %v109, %v273
    %v275 = vpop.f32.mrf.mxu0
    %v276 = vadd.f32 %v105, %v275
    %v277 = vpop.f32.mrf.mxu0
    %v278 = vadd.f32 %v109, %v277
    %279 = vmatprep.mubr.bf16.mxu0 0
    %280 = vmatmul.mubr.bf16.gmra.mxu0 %v182
    %v281 = vpop.f32.mrf.mxu0
    %v282 = vadd.f32 %v105, %v281
    %v283 = vpop.f32.mrf.mxu0
    %v284 = vadd.f32 %v109, %v283
    %v285 = vpop.f32.mrf.mxu0
    %v286 = vadd.f32 %v105, %v285
    %v287 = vpop.f32.mrf.mxu0
    %v288 = vadd.f32 %v109, %v287
    %289 = vmatprep.mubr.bf16.mxu0 0
    %290 = vmatmul.mubr.bf16.gmra.mxu0 %v185
    %v291 = vpop.f32.mrf.mxu0
    %v292 = vadd.f32 %v105, %v291
    %v293 = vpop.f32.mrf.mxu0
    %v294 = vadd.f32 %v109, %v293
    %v295 = vpop.f32.mrf.mxu0
    %v296 = vadd.f32 %v105, %v295
    %v297 = vpop.f32.mrf.mxu0
    %v298 = vadd.f32 %v109, %v297
    %299 = vdwg.mxu0
    %v300 = vmax.f32 %v222, 0.0
    %v301 = vmax.f32 %v224, 0.0
    %v302 = vmax.f32 %v226, 0.0
    %v303 = vmax.f32 %v228, 0.0
    %v304 = vmax.f32 %v232, 0.0
    %v305 = vmax.f32 %v234, 0.0
    %v306 = vmax.f32 %v236, 0.0
    %v307 = vmax.f32 %v238, 0.0
    %v308 = vmax.f32 %v242, 0.0
    %v309 = vmax.f32 %v244, 0.0
    %v310 = vmax.f32 %v246, 0.0
    %v311 = vmax.f32 %v248, 0.0
    %v312 = vmax.f32 %v252, 0.0
    %v313 = vmax.f32 %v254, 0.0
    %v314 = vmax.f32 %v256, 0.0
    %v315 = vmax.f32 %v258, 0.0
    %v316 = vmax.f32 %v262, 0.0
    %v317 = vmax.f32 %v264, 0.0
    %v318 = vmax.f32 %v266, 0.0
    %v319 = vmax.f32 %v268, 0.0
    %v320 = vmax.f32 %v272, 0.0
    %v321 = vmax.f32 %v274, 0.0
    %v322 = vmax.f32 %v276, 0.0
    %v323 = vmax.f32 %v278, 0.0
    %v324 = vmax.f32 %v282, 0.0
    %v325 = vmax.f32 %v284, 0.0
    %v326 = vmax.f32 %v286, 0.0
    %v327 = vmax.f32 %v288, 0.0
    %v328 = vmax.f32 %v292, 0.0
    %v329 = vmax.f32 %v294, 0.0
    %v330 = vmax.f32 %v296, 0.0
    %v331 = vmax.f32 %v298, 0.0
    %v332 = vpack.c.bf16 %v302, %v300
    %v333 = vpack.c.bf16 %v303, %v301
    %v334 = vpack.c.bf16 %v306, %v304
    %v335 = vpack.c.bf16 %v307, %v305
    %v336 = vpack.c.bf16 %v310, %v308
    %v337 = vpack.c.bf16 %v311, %v309
    %v338 = vpack.c.bf16 %v314, %v312
    %v339 = vpack.c.bf16 %v315, %v313
    %v340 = vpack.c.bf16 %v318, %v316
    %v341 = vpack.c.bf16 %v319, %v317
    %v342 = vpack.c.bf16 %v322, %v320
    %v343 = vpack.c.bf16 %v323, %v321
    %v344 = vpack.c.bf16 %v326, %v324
    %v345 = vpack.c.bf16 %v327, %v325
    %v346 = vpack.c.bf16 %v330, %v328
    %v347 = vpack.c.bf16 %v331, %v329
    %v348 = vld [vmem:[%s6 + $0x2] sm:$0x7]
    %v349 = vld [vmem:[#allocation4] sm:$0xff]
    %v350 = vld [vmem:[#allocation4 + $0x8] sm:$0xf]
    %v351 = vld [vmem:[#allocation4 + $0xc] sm:$0xff]
    %v352 = vld [vmem:[#allocation4 + $0x14] sm:$0xf]
    %v353 = vld [vmem:[#allocation4 + $0x18] sm:$0xff]
    %v354 = vld [vmem:[#allocation4 + $0x20] sm:$0xf]
    %v355 = vld [vmem:[#allocation4 + $0x24] sm:$0xff]
    %v356 = vld [vmem:[#allocation4 + $0x2c] sm:$0xf]
    %v357 = vld [vmem:[#allocation4 + $0x30] sm:$0xff]
    %v358 = vld [vmem:[#allocation4 + $0x38] sm:$0xf]
    %v359 = vld [vmem:[#allocation4 + $0x3c] sm:$0xff]
    %v360 = vld [vmem:[#allocation4 + $0x44] sm:$0xf]
    %v361 = vld [vmem:[#allocation4 + $0x48] sm:$0xff]
    %v362 = vld [vmem:[#allocation4 + $0x50] sm:$0xf]
    %v363 = vld [vmem:[#allocation4 + $0x54] sm:$0xff]
    %v364 = vld [vmem:[#allocation4 + $0x5c] sm:$0xf]
    %v365 = vld [vmem:[#allocation4 + $0x60] sm:$0xff]
    %v366 = vld [vmem:[#allocation4 + $0x68] sm:$0xf]
    %v367 = vld [vmem:[#allocation4 + $0x6c] sm:$0xff]
    %v368 = vld [vmem:[#allocation4 + $0x74] sm:$0xf]
    %v369 = vld [vmem:[#allocation4 + $0x78] sm:$0xff]
    %v370 = vld [vmem:[#allocation4 + $0x80] sm:$0xf]
    %v371 = vld [vmem:[#allocation4 + $0x84] sm:$0xff]
    %v372 = vld [vmem:[#allocation4 + $0x8c] sm:$0xf]
    %v373 = vld [vmem:[#allocation4 + $0x90] sm:$0xff]
    %v374 = vld [vmem:[#allocation4 + $0x98] sm:$0xf]
    %v375 = vld [vmem:[#allocation4 + $0x9c] sm:$0xff]
    %v376 = vld [vmem:[#allocation4 + $0xa4] sm:$0xf]
    %v377 = vld [vmem:[#allocation4 + $0xa8] sm:$0xff]
    %v378 = vld [vmem:[#allocation4 + $0xb0] sm:$0xf]
    %v379 = vld [vmem:[#allocation4 + $0xb4] sm:$0xff]
    %v380 = vld [vmem:[#allocation4 + $0xbc] sm:$0xf]
    %v381 = vld [vmem:[#allocation4 + $0xc0] sm:$0xff]
    %v382 = vld [vmem:[#allocation4 + $0xc8] sm:$0xf]
    %v383 = vld [vmem:[#allocation4 + $0xcc] sm:$0xff]
    %v384 = vld [vmem:[#allocation4 + $0xd4] sm:$0xf]
    %v385 = vld [vmem:[#allocation4 + $0xd8] sm:$0xff]
    %v386 = vld [vmem:[#allocation4 + $0xe0] sm:$0xf]
    %v387 = vld [vmem:[#allocation4 + $0xe4] sm:$0xff]
    %v388 = vld [vmem:[#allocation4 + $0xec] sm:$0xf]
    %v389 = vld [vmem:[#allocation4 + $0xf0] sm:$0xff]
    %v390 = vld [vmem:[#allocation4 + $0xf8] sm:$0xf]
    %v391 = vld [vmem:[#allocation4 + $0xfc] sm:$0xff]
    %v392 = vld [vmem:[#allocation4 + $0x104] sm:$0xf]
    %v393 = vld [vmem:[#allocation4 + $0x108] sm:$0xff]
    %v394 = vld [vmem:[#allocation4 + $0x110] sm:$0xf]
    %v395 = vld [vmem:[#allocation4 + $0x114] sm:$0xff]
    %v396 = vld [vmem:[#allocation4 + $0x11c] sm:$0xf]
    %v397 = vld [vmem:[#allocation4 + $0x120] sm:$0xff]
    %v398 = vld [vmem:[#allocation4 + $0x128] sm:$0xf]
    %v399 = vld [vmem:[#allocation4 + $0x12c] sm:$0xff]
    %v400 = vld [vmem:[#allocation4 + $0x134] sm:$0xf]
    %v401 = vld [vmem:[#allocation4 + $0x138] sm:$0xff]
    %v402 = vld [vmem:[#allocation4 + $0x140] sm:$0xf]
    %v403 = vld [vmem:[#allocation4 + $0x144] sm:$0xff]
    %v404 = vld [vmem:[#allocation4 + $0x14c] sm:$0xf]
    %v405 = vld [vmem:[#allocation4 + $0x150] sm:$0xff]
    %v406 = vld [vmem:[#allocation4 + $0x158] sm:$0xf]
    %v407 = vld [vmem:[#allocation4 + $0x15c] sm:$0xff]
    %v408 = vld [vmem:[#allocation4 + $0x164] sm:$0xf]
    %v409 = vld [vmem:[#allocation4 + $0x168] sm:$0xff]
    %v410 = vld [vmem:[#allocation4 + $0x170] sm:$0xf]
    %v411 = vld [vmem:[#allocation4 + $0x174] sm:$0xff]
    %v412 = vld [vmem:[#allocation4 + $0x17c] sm:$0xf]
    %v414 = vlaneseq
    %v415 = vshrl.u32 %v414, 7
    %v416 = vsub.s32 0, %v415
    %v417 = vrot.slane %v348, %v416
    %v418 = vlaneseq
    %v419 = vshrl.u32 %v418, 7
    %v420 = vsub.s32 1, %v419
    %v421 = vrot.slane %v348, %v420
    %v422 = vlaneseq
    %v423 = vshrl.u32 %v422, 7
    %v424 = vsub.s32 2, %v423
    %v425 = vrot.slane %v348, %v424
    %v493 = vunpack.c.l.b16 %v349
    %v494 = vunpack.c.h.b16 %v349
    %v495 = vunpack.c.l.b16 %v350
    %v496 = vunpack.c.l.b16 %v351
    %v497 = vunpack.c.h.b16 %v351
    %v498 = vunpack.c.l.b16 %v352
    %v499 = vunpack.c.l.b16 %v353
    %v500 = vunpack.c.h.b16 %v353
    %v501 = vunpack.c.l.b16 %v354
    %v502 = vunpack.c.l.b16 %v355
    %v503 = vunpack.c.h.b16 %v355
    %v504 = vunpack.c.l.b16 %v356
    %v505 = vunpack.c.l.b16 %v357
    %v506 = vunpack.c.h.b16 %v357
    %v507 = vunpack.c.l.b16 %v358
    %v508 = vunpack.c.l.b16 %v359
    %v509 = vunpack.c.h.b16 %v359
    %v510 = vunpack.c.l.b16 %v360
    %v511 = vunpack.c.l.b16 %v361
    %v512 = vunpack.c.h.b16 %v361
    %v513 = vunpack.c.l.b16 %v362
    %v514 = vunpack.c.l.b16 %v363
    %v515 = vunpack.c.h.b16 %v363
    %v516 = vunpack.c.l.b16 %v364
    %v517 = vunpack.c.l.b16 %v365
    %v518 = vunpack.c.h.b16 %v365
    %v519 = vunpack.c.l.b16 %v366
    %v520 = vunpack.c.l.b16 %v367
    %v521 = vunpack.c.h.b16 %v367
    %v522 = vunpack.c.l.b16 %v368
    %v523 = vunpack.c.l.b16 %v369
    %v524 = vunpack.c.h.b16 %v369
    %v525 = vunpack.c.l.b16 %v370
    %v526 = vunpack.c.l.b16 %v371
    %v527 = vunpack.c.h.b16 %v371
    %v528 = vunpack.c.l.b16 %v372
    %v529 = vunpack.c.l.b16 %v373
    %v530 = vunpack.c.h.b16 %v373
    %v531 = vunpack.c.l.b16 %v374
    %v532 = vunpack.c.l.b16 %v375
    %v533 = vunpack.c.h.b16 %v375
    %v534 = vunpack.c.l.b16 %v376
    %v535 = vunpack.c.l.b16 %v377
    %v536 = vunpack.c.h.b16 %v377
    %v537 = vunpack.c.l.b16 %v378
    %v538 = vunpack.c.l.b16 %v379
    %v539 = vunpack.c.h.b16 %v379
    %v540 = vunpack.c.l.b16 %v380
    %v541 = vunpack.c.l.b16 %v381
    %v542 = vunpack.c.h.b16 %v381
    %v543 = vunpack.c.l.b16 %v382
    %v544 = vunpack.c.l.b16 %v383
    %v545 = vunpack.c.h.b16 %v383
    %v546 = vunpack.c.l.b16 %v384
    %v547 = vunpack.c.l.b16 %v385
    %v548 = vunpack.c.h.b16 %v385
    %v549 = vunpack.c.l.b16 %v386
    %v550 = vunpack.c.l.b16 %v387
    %v551 = vunpack.c.h.b16 %v387
    %v552 = vunpack.c.l.b16 %v388
    %v553 = vunpack.c.l.b16 %v389
    %v554 = vunpack.c.h.b16 %v389
    %v555 = vunpack.c.l.b16 %v390
    %v556 = vunpack.c.l.b16 %v391
    %v557 = vunpack.c.h.b16 %v391
    %v558 = vunpack.c.l.b16 %v392
    %v559 = vunpack.c.l.b16 %v393
    %v560 = vunpack.c.h.b16 %v393
    %v561 = vunpack.c.l.b16 %v394
    %v562 = vunpack.c.l.b16 %v395
    %v563 = vunpack.c.h.b16 %v395
    %v564 = vunpack.c.l.b16 %v396
    %v565 = vunpack.c.l.b16 %v397
    %v566 = vunpack.c.h.b16 %v397
    %v567 = vunpack.c.l.b16 %v398
    %v568 = vunpack.c.l.b16 %v399
    %v569 = vunpack.c.h.b16 %v399
    %v570 = vunpack.c.l.b16 %v400
    %v571 = vunpack.c.l.b16 %v401
    %v572 = vunpack.c.h.b16 %v401
    %v573 = vunpack.c.l.b16 %v402
    %v574 = vunpack.c.l.b16 %v403
    %v575 = vunpack.c.h.b16 %v403
    %v576 = vunpack.c.l.b16 %v404
    %v577 = vunpack.c.l.b16 %v405
    %v578 = vunpack.c.h.b16 %v405
    %v579 = vunpack.c.l.b16 %v406
    %v580 = vunpack.c.l.b16 %v407
    %v581 = vunpack.c.h.b16 %v407
    %v582 = vunpack.c.l.b16 %v408
    %v583 = vunpack.c.l.b16 %v409
    %v584 = vunpack.c.h.b16 %v409
    %v585 = vunpack.c.l.b16 %v410
    %v586 = vunpack.c.l.b16 %v411
    %v587 = vunpack.c.h.b16 %v411
    %v588 = vunpack.c.l.b16 %v412
    %v589 = vpack.c.b16 %v496, %v493
    %v590 = vpack.c.b16 %v497, %v494
    %v591 = vpack.c.b16 %v498, %v495
    %v592 = vpack.c.b16 %v502, %v499
    %v593 = vpack.c.b16 %v503, %v500
    %v594 = vpack.c.b16 %v504, %v501
    %v595 = vpack.c.b16 %v508, %v505
    %v596 = vpack.c.b16 %v509, %v506
    %v597 = vpack.c.b16 %v510, %v507
    %v598 = vpack.c.b16 %v514, %v511
    %v599 = vpack.c.b16 %v515, %v512
    %v600 = vpack.c.b16 %v516, %v513
    %v601 = vpack.c.b16 %v520, %v517
    %v602 = vpack.c.b16 %v521, %v518
    %v603 = vpack.c.b16 %v522, %v519
    %v604 = vpack.c.b16 %v526, %v523
    %v605 = vpack.c.b16 %v527, %v524
    %v606 = vpack.c.b16 %v528, %v525
    %v607 = vpack.c.b16 %v532, %v529
    %v608 = vpack.c.b16 %v533, %v530
    %v609 = vpack.c.b16 %v534, %v531
    %v610 = vpack.c.b16 %v538, %v535
    %v611 = vpack.c.b16 %v539, %v536
    %v612 = vpack.c.b16 %v540, %v537
    %v613 = vpack.c.b16 %v544, %v541
    %v614 = vpack.c.b16 %v545, %v542
    %v615 = vpack.c.b16 %v546, %v543
    %v616 = vpack.c.b16 %v550, %v547
    %v617 = vpack.c.b16 %v551, %v548
    %v618 = vpack.c.b16 %v552, %v549
    %v619 = vpack.c.b16 %v556, %v553
    %v620 = vpack.c.b16 %v557, %v554
    %v621 = vpack.c.b16 %v558, %v555
    %v622 = vpack.c.b16 %v562, %v559
    %v623 = vpack.c.b16 %v563, %v560
    %v624 = vpack.c.b16 %v564, %v561
    %v625 = vpack.c.b16 %v568, %v565
    %v626 = vpack.c.b16 %v569, %v566
    %v627 = vpack.c.b16 %v570, %v567
    %v628 = vpack.c.b16 %v574, %v571
    %v629 = vpack.c.b16 %v575, %v572
    %v630 = vpack.c.b16 %v576, %v573
    %v631 = vpack.c.b16 %v580, %v577
    %v632 = vpack.c.b16 %v581, %v578
    %v633 = vpack.c.b16 %v582, %v579
    %v634 = vpack.c.b16 %v586, %v583
    %v635 = vpack.c.b16 %v587, %v584
    %v636 = vpack.c.b16 %v588, %v585
    %685 = vmatprep.subr.bf16.mxu0 %v611
    %686 = vmatpush1.bf16.msra.mxu0 %v610
    %687 = vmatprep.subr.bf16.mxu0 %v608
    %688 = vmatpush1.bf16.msra.mxu0 %v607
    %689 = vmatprep.subr.bf16.mxu0 %v605
    %690 = vmatpush1.bf16.msra.mxu0 %v604
    %691 = vmatprep.subr.bf16.mxu0 %v602
    %692 = vmatpush1.bf16.msra.mxu0 %v601
    %693 = vmatprep.subr.bf16.mxu0 %v599
    %694 = vmatpush1.bf16.msra.mxu0 %v598
    %695 = vmatprep.subr.bf16.mxu0 %v596
    %696 = vmatpush1.bf16.msra.mxu0 %v595
    %697 = vmatprep.subr.bf16.mxu0 %v593
    %698 = vmatpush1.bf16.msra.mxu0 %v592
    %699 = vmatprep.subr.bf16.mxu0 %v590
    %700 = vmatpush1.bf16.msra.mxu0 %v589
    %701 = vmatprep.subr.bf16.mxu0 %v635
    %702 = vmatpush2.bf16.msra.mxu0 %v634
    %703 = vmatprep.subr.bf16.mxu0 %v632
    %704 = vmatpush2.bf16.msra.mxu0 %v631
    %705 = vmatprep.subr.bf16.mxu0 %v629
    %706 = vmatpush2.bf16.msra.mxu0 %v628
    %707 = vmatprep.subr.bf16.mxu0 %v626
    %708 = vmatpush2.bf16.msra.mxu0 %v625
    %709 = vmatprep.subr.bf16.mxu0 %v623
    %710 = vmatpush2.bf16.msra.mxu0 %v622
    %711 = vmatprep.subr.bf16.mxu0 %v620
    %712 = vmatpush2.bf16.msra.mxu0 %v619
    %713 = vmatprep.subr.bf16.mxu0 %v617
    %714 = vmatpush2.bf16.msra.mxu0 %v616
    %715 = vmatprep.subr.bf16.mxu0 %v614
    %716 = vmatpush2.bf16.msra.mxu0 %v613
    %717 = vmatprep.mubr.bf16.mxu0 %v333
    %718 = vmatmul.mubr.bf16.gmra.mxu0 %v332
    %v719 = vpop.f32.mrf.mxu0
    %v720 = vadd.f32 %v417, %v719
    %v721 = vpop.f32.mrf.mxu0
    %v722 = vadd.f32 %v421, %v721
    %v723 = vpop.f32.mrf.mxu0
    %v724 = vadd.f32 %v417, %v723
    %v725 = vpop.f32.mrf.mxu0
    %v726 = vadd.f32 %v421, %v725
    %727 = vmatprep.mubr.bf16.mxu0 %v335
    %728 = vmatmul.mubr.bf16.gmra.mxu0 %v334
    %v729 = vpop.f32.mrf.mxu0
    %v730 = vadd.f32 %v417, %v729
    %v731 = vpop.f32.mrf.mxu0
    %v732 = vadd.f32 %v421, %v731
    %v733 = vpop.f32.mrf.mxu0
    %v734 = vadd.f32 %v417, %v733
    %v735 = vpop.f32.mrf.mxu0
    %v736 = vadd.f32 %v421, %v735
    %737 = vmatprep.mubr.bf16.mxu0 %v337
    %738 = vmatmul.mubr.bf16.gmra.mxu0 %v336
    %v739 = vpop.f32.mrf.mxu0
    %v740 = vadd.f32 %v417, %v739
    %v741 = vpop.f32.mrf.mxu0
    %v742 = vadd.f32 %v421, %v741
    %v743 = vpop.f32.mrf.mxu0
    %v744 = vadd.f32 %v417, %v743
    %v745 = vpop.f32.mrf.mxu0
    %v746 = vadd.f32 %v421, %v745
    %747 = vmatprep.mubr.bf16.mxu0 %v339
    %748 = vmatmul.mubr.bf16.gmra.mxu0 %v338
    %v749 = vpop.f32.mrf.mxu0
    %v750 = vadd.f32 %v417, %v749
    %v751 = vpop.f32.mrf.mxu0
    %v752 = vadd.f32 %v421, %v751
    %v753 = vpop.f32.mrf.mxu0
    %v754 = vadd.f32 %v417, %v753
    %v755 = vpop.f32.mrf.mxu0
    %v756 = vadd.f32 %v421, %v755
    %757 = vmatprep.mubr.bf16.mxu0 %v341
    %758 = vmatmul.mubr.bf16.gmra.mxu0 %v340
    %v759 = vpop.f32.mrf.mxu0
    %v760 = vadd.f32 %v417, %v759
    %v761 = vpop.f32.mrf.mxu0
    %v762 = vadd.f32 %v421, %v761
    %v763 = vpop.f32.mrf.mxu0
    %v764 = vadd.f32 %v417, %v763
    %v765 = vpop.f32.mrf.mxu0
    %v766 = vadd.f32 %v421, %v765
    %767 = vmatprep.mubr.bf16.mxu0 %v343
    %768 = vmatmul.mubr.bf16.gmra.mxu0 %v342
    %v769 = vpop.f32.mrf.mxu0
    %v770 = vadd.f32 %v417, %v769
    %v771 = vpop.f32.mrf.mxu0
    %v772 = vadd.f32 %v421, %v771
    %v773 = vpop.f32.mrf.mxu0
    %v774 = vadd.f32 %v417, %v773
    %v775 = vpop.f32.mrf.mxu0
    %v776 = vadd.f32 %v421, %v775
    %777 = vmatprep.mubr.bf16.mxu0 %v345
    %778 = vmatmul.mubr.bf16.gmra.mxu0 %v344
    %v779 = vpop.f32.mrf.mxu0
    %v780 = vadd.f32 %v417, %v779
    %v781 = vpop.f32.mrf.mxu0
    %v782 = vadd.f32 %v421, %v781
    %v783 = vpop.f32.mrf.mxu0
    %v784 = vadd.f32 %v417, %v783
    %v785 = vpop.f32.mrf.mxu0
    %v786 = vadd.f32 %v421, %v785
    %787 = vmatprep.mubr.bf16.mxu0 %v347
    %788 = vmatmul.mubr.bf16.gmra.mxu0 %v346
    %v789 = vpop.f32.mrf.mxu0
    %v790 = vadd.f32 %v417, %v789
    %v791 = vpop.f32.mrf.mxu0
    %v792 = vadd.f32 %v421, %v791
    %v793 = vpop.f32.mrf.mxu0
    %v794 = vadd.f32 %v417, %v793
    %v795 = vpop.f32.mrf.mxu0
    %v796 = vadd.f32 %v421, %v795
    %797 = vdwg.mxu0
    %798 = vmatprep.subr.bf16.mxu0 0
    %799 = vmatpush1.bf16.msra.mxu0 %v612
    %800 = vmatprep.subr.bf16.mxu0 0
    %801 = vmatpush1.bf16.msra.mxu0 %v609
    %802 = vmatprep.subr.bf16.mxu0 0
    %803 = vmatpush1.bf16.msra.mxu0 %v606
    %804 = vmatprep.subr.bf16.mxu0 0
    %805 = vmatpush1.bf16.msra.mxu0 %v603
    %806 = vmatprep.subr.bf16.mxu0 0
    %807 = vmatpush1.bf16.msra.mxu0 %v600
    %808 = vmatprep.subr.bf16.mxu0 0
    %809 = vmatpush1.bf16.msra.mxu0 %v597
    %810 = vmatprep.subr.bf16.mxu0 0
    %811 = vmatpush1.bf16.msra.mxu0 %v594
    %812 = vmatprep.subr.bf16.mxu0 0
    %813 = vmatpush1.bf16.msra.mxu0 %v591
    %814 = vmatprep.subr.bf16.mxu0 0
    %815 = vmatpush2.bf16.msra.mxu0 %v636
    %816 = vmatprep.subr.bf16.mxu0 0
    %817 = vmatpush2.bf16.msra.mxu0 %v633
    %818 = vmatprep.subr.bf16.mxu0 0
    %819 = vmatpush2.bf16.msra.mxu0 %v630
    %820 = vmatprep.subr.bf16.mxu0 0
    %821 = vmatpush2.bf16.msra.mxu0 %v627
    %822 = vmatprep.subr.bf16.mxu0 0
    %823 = vmatpush2.bf16.msra.mxu0 %v624
    %824 = vmatprep.subr.bf16.mxu0 0
    %825 = vmatpush2.bf16.msra.mxu0 %v621
    %826 = vmatprep.subr.bf16.mxu0 0
    %827 = vmatpush2.bf16.msra.mxu0 %v618
    %828 = vmatprep.subr.bf16.mxu0 0
    %829 = vmatpush2.bf16.msra.mxu0 %v615
    %830 = vmatprep.mubr.bf16.mxu0 %v333
    %831 = vmatmul.mubr.bf16.gmra.mxu0 %v332
    %v832 = vpop.f32.mrf.mxu0
    %v833 = vadd.f32 %v425, %v832
    %v834 = vpop.f32.mrf.mxu0
    %v835 = vpop.f32.mrf.mxu0
    %v836 = vadd.f32 %v425, %v835
    %v837 = vpop.f32.mrf.mxu0
    %838 = vmatprep.mubr.bf16.mxu0 %v335
    %839 = vmatmul.mubr.bf16.gmra.mxu0 %v334
    %v840 = vpop.f32.mrf.mxu0
    %v841 = vadd.f32 %v425, %v840
    %v842 = vpop.f32.mrf.mxu0
    %v843 = vpop.f32.mrf.mxu0
    %v844 = vadd.f32 %v425, %v843
    %v845 = vpop.f32.mrf.mxu0
    %846 = vmatprep.mubr.bf16.mxu0 %v337
    %847 = vmatmul.mubr.bf16.gmra.mxu0 %v336
    %v848 = vpop.f32.mrf.mxu0
    %v849 = vadd.f32 %v425, %v848
    %v850 = vpop.f32.mrf.mxu0
    %v851 = vpop.f32.mrf.mxu0
    %v852 = vadd.f32 %v425, %v851
    %v853 = vpop.f32.mrf.mxu0
    %854 = vmatprep.mubr.bf16.mxu0 %v339
    %855 = vmatmul.mubr.bf16.gmra.mxu0 %v338
    %v856 = vpop.f32.mrf.mxu0
    %v857 = vadd.f32 %v425, %v856
    %v858 = vpop.f32.mrf.mxu0
    %v859 = vpop.f32.mrf.mxu0
    %v860 = vadd.f32 %v425, %v859
    %v861 = vpop.f32.mrf.mxu0
    %862 = vmatprep.mubr.bf16.mxu0 %v341
    %863 = vmatmul.mubr.bf16.gmra.mxu0 %v340
    %v864 = vpop.f32.mrf.mxu0
    %v865 = vadd.f32 %v425, %v864
    %v866 = vpop.f32.mrf.mxu0
    %v867 = vpop.f32.mrf.mxu0
    %v868 = vadd.f32 %v425, %v867
    %v869 = vpop.f32.mrf.mxu0
    %870 = vmatprep.mubr.bf16.mxu0 %v343
    %871 = vmatmul.mubr.bf16.gmra.mxu0 %v342
    %v872 = vpop.f32.mrf.mxu0
    %v873 = vadd.f32 %v425, %v872
    %v874 = vpop.f32.mrf.mxu0
    %v875 = vpop.f32.mrf.mxu0
    %v876 = vadd.f32 %v425, %v875
    %v877 = vpop.f32.mrf.mxu0
    %878 = vmatprep.mubr.bf16.mxu0 %v345
    %879 = vmatmul.mubr.bf16.gmra.mxu0 %v344
    %v880 = vpop.f32.mrf.mxu0
    %v881 = vadd.f32 %v425, %v880
    %v882 = vpop.f32.mrf.mxu0
    %v883 = vpop.f32.mrf.mxu0
    %v884 = vadd.f32 %v425, %v883
    %v885 = vpop.f32.mrf.mxu0
    %886 = vmatprep.mubr.bf16.mxu0 %v347
    %887 = vmatmul.mubr.bf16.gmra.mxu0 %v346
    %v888 = vpop.f32.mrf.mxu0
    %v889 = vadd.f32 %v425, %v888
    %v890 = vpop.f32.mrf.mxu0
    %v891 = vpop.f32.mrf.mxu0
    %v892 = vadd.f32 %v425, %v891
    %v893 = vpop.f32.mrf.mxu0
    %894 = vdwg.mxu0
    %v895 = vmax.f32 %v720, 0.0
    %v896 = vmax.f32 %v722, 0.0
    %v897 = vmax.f32 %v833, 0.0
    %v898 = vmax.f32 %v724, 0.0
    %v899 = vmax.f32 %v726, 0.0
    %v900 = vmax.f32 %v836, 0.0
    %v901 = vmax.f32 %v730, 0.0
    %v902 = vmax.f32 %v732, 0.0
    %v903 = vmax.f32 %v841, 0.0
    %v904 = vmax.f32 %v734, 0.0
    %v905 = vmax.f32 %v736, 0.0
    %v906 = vmax.f32 %v844, 0.0
    %v907 = vmax.f32 %v740, 0.0
    %v908 = vmax.f32 %v742, 0.0
    %v909 = vmax.f32 %v849, 0.0
    %v910 = vmax.f32 %v744, 0.0
    %v911 = vmax.f32 %v746, 0.0
    %v912 = vmax.f32 %v852, 0.0
    %v913 = vmax.f32 %v750, 0.0
    %v914 = vmax.f32 %v752, 0.0
    %v915 = vmax.f32 %v857, 0.0
    %v916 = vmax.f32 %v754, 0.0
    %v917 = vmax.f32 %v756, 0.0
    %v918 = vmax.f32 %v860, 0.0
    %v919 = vmax.f32 %v760, 0.0
    %v920 = vmax.f32 %v762, 0.0
    %v921 = vmax.f32 %v865, 0.0
    %v922 = vmax.f32 %v764, 0.0
    %v923 = vmax.f32 %v766, 0.0
    %v924 = vmax.f32 %v868, 0.0
    %v925 = vmax.f32 %v770, 0.0
    %v926 = vmax.f32 %v772, 0.0
    %v927 = vmax.f32 %v873, 0.0
    %v928 = vmax.f32 %v774, 0.0
    %v929 = vmax.f32 %v776, 0.0
    %v930 = vmax.f32 %v876, 0.0
    %v931 = vmax.f32 %v780, 0.0
    %v932 = vmax.f32 %v782, 0.0
    %v933 = vmax.f32 %v881, 0.0
    %v934 = vmax.f32 %v784, 0.0
    %v935 = vmax.f32 %v786, 0.0
    %v936 = vmax.f32 %v884, 0.0
    %v937 = vmax.f32 %v790, 0.0
    %v938 = vmax.f32 %v792, 0.0
    %v939 = vmax.f32 %v889, 0.0
    %v940 = vmax.f32 %v794, 0.0
    %v941 = vmax.f32 %v796, 0.0
    %v942 = vmax.f32 %v892, 0.0
    %v943 = vpack.c.bf16 %v898, %v895
    %v944 = vpack.c.bf16 %v899, %v896
    %v945 = vpack.c.bf16 %v900, %v897
    %v946 = vpack.c.bf16 %v904, %v901
    %v947 = vpack.c.bf16 %v905, %v902
    %v948 = vpack.c.bf16 %v906, %v903
    %v949 = vpack.c.bf16 %v910, %v907
    %v950 = vpack.c.bf16 %v911, %v908
    %v951 = vpack.c.bf16 %v912, %v909
    %v952 = vpack.c.bf16 %v916, %v913
    %v953 = vpack.c.bf16 %v917, %v914
    %v954 = vpack.c.bf16 %v918, %v915
    %v955 = vpack.c.bf16 %v922, %v919
    %v956 = vpack.c.bf16 %v923, %v920
    %v957 = vpack.c.bf16 %v924, %v921
    %v958 = vpack.c.bf16 %v928, %v925
    %v959 = vpack.c.bf16 %v929, %v926
    %v960 = vpack.c.bf16 %v930, %v927
    %v961 = vpack.c.bf16 %v934, %v931
    %v962 = vpack.c.bf16 %v935, %v932
    %v963 = vpack.c.bf16 %v936, %v933
    %v964 = vpack.c.bf16 %v940, %v937
    %v965 = vpack.c.bf16 %v941, %v938
    %v966 = vpack.c.bf16 %v942, %v939
    %v967 = vld [vmem:[%s6 + $0x5] sm:$0xf]
    %v968 = vld [vmem:[#allocation6] sm:$0xff]
    %v969 = vld [vmem:[#allocation6 + $0x8] sm:$0xff]
    %v970 = vld [vmem:[#allocation6 + $0x10] sm:$0xff]
    %v971 = vld [vmem:[#allocation6 + $0x18] sm:$0xff]
    %v972 = vld [vmem:[#allocation6 + $0x20] sm:$0xff]
    %v973 = vld [vmem:[#allocation6 + $0x28] sm:$0xff]
    %v974 = vld [vmem:[#allocation6 + $0x30] sm:$0xff]
    %v975 = vld [vmem:[#allocation6 + $0x38] sm:$0xff]
    %v976 = vld [vmem:[#allocation6 + $0x40] sm:$0xff]
    %v977 = vld [vmem:[#allocation6 + $0x48] sm:$0xff]
    %v978 = vld [vmem:[#allocation6 + $0x50] sm:$0xff]
    %v979 = vld [vmem:[#allocation6 + $0x58] sm:$0xff]
    %v980 = vld [vmem:[#allocation6 + $0x60] sm:$0xff]
    %v981 = vld [vmem:[#allocation6 + $0x68] sm:$0xff]
    %v982 = vld [vmem:[#allocation6 + $0x70] sm:$0xff]
    %v983 = vld [vmem:[#allocation6 + $0x78] sm:$0xff]
    %v984 = vld [vmem:[#allocation6 + $0x80] sm:$0xff]
    %v985 = vld [vmem:[#allocation6 + $0x88] sm:$0xff]
    %v986 = vld [vmem:[#allocation6 + $0x90] sm:$0xff]
    %v987 = vld [vmem:[#allocation6 + $0x98] sm:$0xff]
    %v988 = vld [vmem:[#allocation6 + $0xa0] sm:$0xff]
    %v989 = vld [vmem:[#allocation6 + $0xa8] sm:$0xff]
    %v990 = vld [vmem:[#allocation6 + $0xb0] sm:$0xff]
    %v991 = vld [vmem:[#allocation6 + $0xb8] sm:$0xff]
    %v992 = vld [vmem:[#allocation6 + $0xc0] sm:$0xff]
    %v993 = vld [vmem:[#allocation6 + $0xc8] sm:$0xff]
    %v994 = vld [vmem:[#allocation6 + $0xd0] sm:$0xff]
    %v995 = vld [vmem:[#allocation6 + $0xd8] sm:$0xff]
    %v996 = vld [vmem:[#allocation6 + $0xe0] sm:$0xff]
    %v997 = vld [vmem:[#allocation6 + $0xe8] sm:$0xff]
    %v998 = vld [vmem:[#allocation6 + $0xf0] sm:$0xff]
    %v999 = vld [vmem:[#allocation6 + $0xf8] sm:$0xff]
    %v1000 = vld [vmem:[#allocation6 + $0x100] sm:$0xff]
    %v1001 = vld [vmem:[#allocation6 + $0x108] sm:$0xff]
    %v1002 = vld [vmem:[#allocation6 + $0x110] sm:$0xff]
    %v1003 = vld [vmem:[#allocation6 + $0x118] sm:$0xff]
    %v1004 = vld [vmem:[#allocation6 + $0x120] sm:$0xff]
    %v1005 = vld [vmem:[#allocation6 + $0x128] sm:$0xff]
    %v1006 = vld [vmem:[#allocation6 + $0x130] sm:$0xff]
    %v1007 = vld [vmem:[#allocation6 + $0x138] sm:$0xff]
    %v1008 = vld [vmem:[#allocation6 + $0x140] sm:$0xff]
    %v1009 = vld [vmem:[#allocation6 + $0x148] sm:$0xff]
    %v1010 = vld [vmem:[#allocation6 + $0x150] sm:$0xff]
    %v1011 = vld [vmem:[#allocation6 + $0x158] sm:$0xff]
    %v1012 = vld [vmem:[#allocation6 + $0x160] sm:$0xff]
    %v1013 = vld [vmem:[#allocation6 + $0x168] sm:$0xff]
    %v1014 = vld [vmem:[#allocation6 + $0x170] sm:$0xff]
    %v1015 = vld [vmem:[#allocation6 + $0x178] sm:$0xff]
    %v1016 = vld [vmem:[#allocation6 + $0x180] sm:$0xff]
    %v1017 = vld [vmem:[#allocation6 + $0x188] sm:$0xff]
    %v1018 = vld [vmem:[#allocation6 + $0x190] sm:$0xff]
    %v1019 = vld [vmem:[#allocation6 + $0x198] sm:$0xff]
    %v1020 = vld [vmem:[#allocation6 + $0x1a0] sm:$0xff]
    %v1021 = vld [vmem:[#allocation6 + $0x1a8] sm:$0xff]
    %v1022 = vld [vmem:[#allocation6 + $0x1b0] sm:$0xff]
    %v1023 = vld [vmem:[#allocation6 + $0x1b8] sm:$0xff]
    %v1024 = vld [vmem:[#allocation6 + $0x1c0] sm:$0xff]
    %v1025 = vld [vmem:[#allocation6 + $0x1c8] sm:$0xff]
    %v1026 = vld [vmem:[#allocation6 + $0x1d0] sm:$0xff]
    %v1027 = vld [vmem:[#allocation6 + $0x1d8] sm:$0xff]
    %v1028 = vld [vmem:[#allocation6 + $0x1e0] sm:$0xff]
    %v1029 = vld [vmem:[#allocation6 + $0x1e8] sm:$0xff]
    %v1030 = vld [vmem:[#allocation6 + $0x1f0] sm:$0xff]
    %v1031 = vld [vmem:[#allocation6 + $0x1f8] sm:$0xff]
    %v1032 = vld [vmem:[#allocation6 + $0x200] sm:$0xff]
    %v1033 = vld [vmem:[#allocation6 + $0x208] sm:$0xff]
    %v1034 = vld [vmem:[#allocation6 + $0x210] sm:$0xff]
    %v1035 = vld [vmem:[#allocation6 + $0x218] sm:$0xff]
    %v1036 = vld [vmem:[#allocation6 + $0x220] sm:$0xff]
    %v1037 = vld [vmem:[#allocation6 + $0x228] sm:$0xff]
    %v1038 = vld [vmem:[#allocation6 + $0x230] sm:$0xff]
    %v1039 = vld [vmem:[#allocation6 + $0x238] sm:$0xff]
    %v1040 = vld [vmem:[#allocation6 + $0x240] sm:$0xff]
    %v1041 = vld [vmem:[#allocation6 + $0x248] sm:$0xff]
    %v1042 = vld [vmem:[#allocation6 + $0x250] sm:$0xff]
    %v1043 = vld [vmem:[#allocation6 + $0x258] sm:$0xff]
    %v1044 = vld [vmem:[#allocation6 + $0x260] sm:$0xff]
    %v1045 = vld [vmem:[#allocation6 + $0x268] sm:$0xff]
    %v1046 = vld [vmem:[#allocation6 + $0x270] sm:$0xff]
    %v1047 = vld [vmem:[#allocation6 + $0x278] sm:$0xff]
    %v1048 = vld [vmem:[#allocation6 + $0x280] sm:$0xff]
    %v1049 = vld [vmem:[#allocation6 + $0x288] sm:$0xff]
    %v1050 = vld [vmem:[#allocation6 + $0x290] sm:$0xff]
    %v1051 = vld [vmem:[#allocation6 + $0x298] sm:$0xff]
    %v1052 = vld [vmem:[#allocation6 + $0x2a0] sm:$0xff]
    %v1053 = vld [vmem:[#allocation6 + $0x2a8] sm:$0xff]
    %v1054 = vld [vmem:[#allocation6 + $0x2b0] sm:$0xff]
    %v1055 = vld [vmem:[#allocation6 + $0x2b8] sm:$0xff]
    %v1056 = vld [vmem:[#allocation6 + $0x2c0] sm:$0xff]
    %v1057 = vld [vmem:[#allocation6 + $0x2c8] sm:$0xff]
    %v1058 = vld [vmem:[#allocation6 + $0x2d0] sm:$0xff]
    %v1059 = vld [vmem:[#allocation6 + $0x2d8] sm:$0xff]
    %v1060 = vld [vmem:[#allocation6 + $0x2e0] sm:$0xff]
    %v1061 = vld [vmem:[#allocation6 + $0x2e8] sm:$0xff]
    %v1062 = vld [vmem:[#allocation6 + $0x2f0] sm:$0xff]
    %v1063 = vld [vmem:[#allocation6 + $0x2f8] sm:$0xff]
    %v1065 = vlaneseq
    %v1066 = vshrl.u32 %v1065, 7
    %v1067 = vsub.s32 0, %v1066
    %v1068 = vrot.slane %v967, %v1067
    %v1069 = vlaneseq
    %v1070 = vshrl.u32 %v1069, 7
    %v1071 = vsub.s32 1, %v1070
    %v1072 = vrot.slane %v967, %v1071
    %v1073 = vlaneseq
    %v1074 = vshrl.u32 %v1073, 7
    %v1075 = vsub.s32 2, %v1074
    %v1076 = vrot.slane %v967, %v1075
    %v1077 = vlaneseq
    %v1078 = vshrl.u32 %v1077, 7
    %v1079 = vsub.s32 3, %v1078
    %v1080 = vrot.slane %v967, %v1079
    %v1181 = vunpack.c.l.b16 %v968
    %v1182 = vunpack.c.h.b16 %v968
    %v1183 = vunpack.c.l.b16 %v969
    %v1184 = vunpack.c.h.b16 %v969
    %v1185 = vunpack.c.l.b16 %v970
    %v1186 = vunpack.c.h.b16 %v970
    %v1187 = vunpack.c.l.b16 %v971
    %v1188 = vunpack.c.h.b16 %v971
    %v1189 = vunpack.c.l.b16 %v972
    %v1190 = vunpack.c.h.b16 %v972
    %v1191 = vunpack.c.l.b16 %v973
    %v1192 = vunpack.c.h.b16 %v973
    %v1193 = vunpack.c.l.b16 %v974
    %v1194 = vunpack.c.h.b16 %v974
    %v1195 = vunpack.c.l.b16 %v975
    %v1196 = vunpack.c.h.b16 %v975
    %v1197 = vunpack.c.l.b16 %v976
    %v1198 = vunpack.c.h.b16 %v976
    %v1199 = vunpack.c.l.b16 %v977
    %v1200 = vunpack.c.h.b16 %v977
    %v1201 = vunpack.c.l.b16 %v978
    %v1202 = vunpack.c.h.b16 %v978
    %v1203 = vunpack.c.l.b16 %v979
    %v1204 = vunpack.c.h.b16 %v979
    %v1205 = vunpack.c.l.b16 %v980
    %v1206 = vunpack.c.h.b16 %v980
    %v1207 = vunpack.c.l.b16 %v981
    %v1208 = vunpack.c.h.b16 %v981
    %v1209 = vunpack.c.l.b16 %v982
    %v1210 = vunpack.c.h.b16 %v982
    %v1211 = vunpack.c.l.b16 %v983
    %v1212 = vunpack.c.h.b16 %v983
    %v1213 = vunpack.c.l.b16 %v984
    %v1214 = vunpack.c.h.b16 %v984
    %v1215 = vunpack.c.l.b16 %v985
    %v1216 = vunpack.c.h.b16 %v985
    %v1217 = vunpack.c.l.b16 %v986
    %v1218 = vunpack.c.h.b16 %v986
    %v1219 = vunpack.c.l.b16 %v987
    %v1220 = vunpack.c.h.b16 %v987
    %v1221 = vunpack.c.l.b16 %v988
    %v1222 = vunpack.c.h.b16 %v988
    %v1223 = vunpack.c.l.b16 %v989
    %v1224 = vunpack.c.h.b16 %v989
    %v1225 = vunpack.c.l.b16 %v990
    %v1226 = vunpack.c.h.b16 %v990
    %v1227 = vunpack.c.l.b16 %v991
    %v1228 = vunpack.c.h.b16 %v991
    %v1229 = vunpack.c.l.b16 %v992
    %v1230 = vunpack.c.h.b16 %v992
    %v1231 = vunpack.c.l.b16 %v993
    %v1232 = vunpack.c.h.b16 %v993
    %v1233 = vunpack.c.l.b16 %v994
    %v1234 = vunpack.c.h.b16 %v994
    %v1235 = vunpack.c.l.b16 %v995
    %v1236 = vunpack.c.h.b16 %v995
    %v1237 = vunpack.c.l.b16 %v996
    %v1238 = vunpack.c.h.b16 %v996
    %v1239 = vunpack.c.l.b16 %v997
    %v1240 = vunpack.c.h.b16 %v997
    %v1241 = vunpack.c.l.b16 %v998
    %v1242 = vunpack.c.h.b16 %v998
    %v1243 = vunpack.c.l.b16 %v999
    %v1244 = vunpack.c.h.b16 %v999
    %v1245 = vunpack.c.l.b16 %v1000
    %v1246 = vunpack.c.h.b16 %v1000
    %v1247 = vunpack.c.l.b16 %v1001
    %v1248 = vunpack.c.h.b16 %v1001
    %v1249 = vunpack.c.l.b16 %v1002
    %v1250 = vunpack.c.h.b16 %v1002
    %v1251 = vunpack.c.l.b16 %v1003
    %v1252 = vunpack.c.h.b16 %v1003
    %v1253 = vunpack.c.l.b16 %v1004
    %v1254 = vunpack.c.h.b16 %v1004
    %v1255 = vunpack.c.l.b16 %v1005
    %v1256 = vunpack.c.h.b16 %v1005
    %v1257 = vunpack.c.l.b16 %v1006
    %v1258 = vunpack.c.h.b16 %v1006
    %v1259 = vunpack.c.l.b16 %v1007
    %v1260 = vunpack.c.h.b16 %v1007
    %v1261 = vunpack.c.l.b16 %v1008
    %v1262 = vunpack.c.h.b16 %v1008
    %v1263 = vunpack.c.l.b16 %v1009
    %v1264 = vunpack.c.h.b16 %v1009
    %v1265 = vunpack.c.l.b16 %v1010
    %v1266 = vunpack.c.h.b16 %v1010
    %v1267 = vunpack.c.l.b16 %v1011
    %v1268 = vunpack.c.h.b16 %v1011
    %v1269 = vunpack.c.l.b16 %v1012
    %v1270 = vunpack.c.h.b16 %v1012
    %v1271 = vunpack.c.l.b16 %v1013
    %v1272 = vunpack.c.h.b16 %v1013
    %v1273 = vunpack.c.l.b16 %v1014
    %v1274 = vunpack.c.h.b16 %v1014
    %v1275 = vunpack.c.l.b16 %v1015
    %v1276 = vunpack.c.h.b16 %v1015
    %v1277 = vunpack.c.l.b16 %v1016
    %v1278 = vunpack.c.h.b16 %v1016
    %v1279 = vunpack.c.l.b16 %v1017
    %v1280 = vunpack.c.h.b16 %v1017
    %v1281 = vunpack.c.l.b16 %v1018
    %v1282 = vunpack.c.h.b16 %v1018
    %v1283 = vunpack.c.l.b16 %v1019
    %v1284 = vunpack.c.h.b16 %v1019
    %v1285 = vunpack.c.l.b16 %v1020
    %v1286 = vunpack.c.h.b16 %v1020
    %v1287 = vunpack.c.l.b16 %v1021
    %v1288 = vunpack.c.h.b16 %v1021
    %v1289 = vunpack.c.l.b16 %v1022
    %v1290 = vunpack.c.h.b16 %v1022
    %v1291 = vunpack.c.l.b16 %v1023
    %v1292 = vunpack.c.h.b16 %v1023
    %v1293 = vunpack.c.l.b16 %v1024
    %v1294 = vunpack.c.h.b16 %v1024
    %v1295 = vunpack.c.l.b16 %v1025
    %v1296 = vunpack.c.h.b16 %v1025
    %v1297 = vunpack.c.l.b16 %v1026
    %v1298 = vunpack.c.h.b16 %v1026
    %v1299 = vunpack.c.l.b16 %v1027
    %v1300 = vunpack.c.h.b16 %v1027
    %v1301 = vunpack.c.l.b16 %v1028
    %v1302 = vunpack.c.h.b16 %v1028
    %v1303 = vunpack.c.l.b16 %v1029
    %v1304 = vunpack.c.h.b16 %v1029
    %v1305 = vunpack.c.l.b16 %v1030
    %v1306 = vunpack.c.h.b16 %v1030
    %v1307 = vunpack.c.l.b16 %v1031
    %v1308 = vunpack.c.h.b16 %v1031
    %v1309 = vunpack.c.l.b16 %v1032
    %v1310 = vunpack.c.h.b16 %v1032
    %v1311 = vunpack.c.l.b16 %v1033
    %v1312 = vunpack.c.h.b16 %v1033
    %v1313 = vunpack.c.l.b16 %v1034
    %v1314 = vunpack.c.h.b16 %v1034
    %v1315 = vunpack.c.l.b16 %v1035
    %v1316 = vunpack.c.h.b16 %v1035
    %v1317 = vunpack.c.l.b16 %v1036
    %v1318 = vunpack.c.h.b16 %v1036
    %v1319 = vunpack.c.l.b16 %v1037
    %v1320 = vunpack.c.h.b16 %v1037
    %v1321 = vunpack.c.l.b16 %v1038
    %v1322 = vunpack.c.h.b16 %v1038
    %v1323 = vunpack.c.l.b16 %v1039
    %v1324 = vunpack.c.h.b16 %v1039
    %v1325 = vunpack.c.l.b16 %v1040
    %v1326 = vunpack.c.h.b16 %v1040
    %v1327 = vunpack.c.l.b16 %v1041
    %v1328 = vunpack.c.h.b16 %v1041
    %v1329 = vunpack.c.l.b16 %v1042
    %v1330 = vunpack.c.h.b16 %v1042
    %v1331 = vunpack.c.l.b16 %v1043
    %v1332 = vunpack.c.h.b16 %v1043
    %v1333 = vunpack.c.l.b16 %v1044
    %v1334 = vunpack.c.h.b16 %v1044
    %v1335 = vunpack.c.l.b16 %v1045
    %v1336 = vunpack.c.h.b16 %v1045
    %v1337 = vunpack.c.l.b16 %v1046
    %v1338 = vunpack.c.h.b16 %v1046
    %v1339 = vunpack.c.l.b16 %v1047
    %v1340 = vunpack.c.h.b16 %v1047
    %v1341 = vunpack.c.l.b16 %v1048
    %v1342 = vunpack.c.h.b16 %v1048
    %v1343 = vunpack.c.l.b16 %v1049
    %v1344 = vunpack.c.h.b16 %v1049
    %v1345 = vunpack.c.l.b16 %v1050
    %v1346 = vunpack.c.h.b16 %v1050
    %v1347 = vunpack.c.l.b16 %v1051
    %v1348 = vunpack.c.h.b16 %v1051
    %v1349 = vunpack.c.l.b16 %v1052
    %v1350 = vunpack.c.h.b16 %v1052
    %v1351 = vunpack.c.l.b16 %v1053
    %v1352 = vunpack.c.h.b16 %v1053
    %v1353 = vunpack.c.l.b16 %v1054
    %v1354 = vunpack.c.h.b16 %v1054
    %v1355 = vunpack.c.l.b16 %v1055
    %v1356 = vunpack.c.h.b16 %v1055
    %v1357 = vunpack.c.l.b16 %v1056
    %v1358 = vunpack.c.h.b16 %v1056
    %v1359 = vunpack.c.l.b16 %v1057
    %v1360 = vunpack.c.h.b16 %v1057
    %v1361 = vunpack.c.l.b16 %v1058
    %v1362 = vunpack.c.h.b16 %v1058
    %v1363 = vunpack.c.l.b16 %v1059
    %v1364 = vunpack.c.h.b16 %v1059
    %v1365 = vunpack.c.l.b16 %v1060
    %v1366 = vunpack.c.h.b16 %v1060
    %v1367 = vunpack.c.l.b16 %v1061
    %v1368 = vunpack.c.h.b16 %v1061
    %v1369 = vunpack.c.l.b16 %v1062
    %v1370 = vunpack.c.h.b16 %v1062
    %v1371 = vunpack.c.l.b16 %v1063
    %v1372 = vunpack.c.h.b16 %v1063
    %v1373 = vpack.c.b16 %v1185, %v1181
    %v1374 = vpack.c.b16 %v1186, %v1182
    %v1375 = vpack.c.b16 %v1187, %v1183
    %v1376 = vpack.c.b16 %v1188, %v1184
    %v1377 = vpack.c.b16 %v1193, %v1189
    %v1378 = vpack.c.b16 %v1194, %v1190
    %v1379 = vpack.c.b16 %v1195, %v1191
    %v1380 = vpack.c.b16 %v1196, %v1192
    %v1381 = vpack.c.b16 %v1201, %v1197
    %v1382 = vpack.c.b16 %v1202, %v1198
    %v1383 = vpack.c.b16 %v1203, %v1199
    %v1384 = vpack.c.b16 %v1204, %v1200
    %v1385 = vpack.c.b16 %v1209, %v1205
    %v1386 = vpack.c.b16 %v1210, %v1206
    %v1387 = vpack.c.b16 %v1211, %v1207
    %v1388 = vpack.c.b16 %v1212, %v1208
    %v1389 = vpack.c.b16 %v1217, %v1213
    %v1390 = vpack.c.b16 %v1218, %v1214
    %v1391 = vpack.c.b16 %v1219, %v1215
    %v1392 = vpack.c.b16 %v1220, %v1216
    %v1393 = vpack.c.b16 %v1225, %v1221
    %v1394 = vpack.c.b16 %v1226, %v1222
    %v1395 = vpack.c.b16 %v1227, %v1223
    %v1396 = vpack.c.b16 %v1228, %v1224
    %v1397 = vpack.c.b16 %v1233, %v1229
    %v1398 = vpack.c.b16 %v1234, %v1230
    %v1399 = vpack.c.b16 %v1235, %v1231
    %v1400 = vpack.c.b16 %v1236, %v1232
    %v1401 = vpack.c.b16 %v1241, %v1237
    %v1402 = vpack.c.b16 %v1242, %v1238
    %v1403 = vpack.c.b16 %v1243, %v1239
    %v1404 = vpack.c.b16 %v1244, %v1240
    %v1405 = vpack.c.b16 %v1249, %v1245
    %v1406 = vpack.c.b16 %v1250, %v1246
    %v1407 = vpack.c.b16 %v1251, %v1247
    %v1408 = vpack.c.b16 %v1252, %v1248
    %v1409 = vpack.c.b16 %v1257, %v1253
    %v1410 = vpack.c.b16 %v1258, %v1254
    %v1411 = vpack.c.b16 %v1259, %v1255
    %v1412 = vpack.c.b16 %v1260, %v1256
    %v1413 = vpack.c.b16 %v1265, %v1261
    %v1414 = vpack.c.b16 %v1266, %v1262
    %v1415 = vpack.c.b16 %v1267, %v1263
    %v1416 = vpack.c.b16 %v1268, %v1264
    %v1417 = vpack.c.b16 %v1273, %v1269
    %v1418 = vpack.c.b16 %v1274, %v1270
    %v1419 = vpack.c.b16 %v1275, %v1271
    %v1420 = vpack.c.b16 %v1276, %v1272
    %v1421 = vpack.c.b16 %v1281, %v1277
    %v1422 = vpack.c.b16 %v1282, %v1278
    %v1423 = vpack.c.b16 %v1283, %v1279
    %v1424 = vpack.c.b16 %v1284, %v1280
    %v1425 = vpack.c.b16 %v1289, %v1285
    %v1426 = vpack.c.b16 %v1290, %v1286
    %v1427 = vpack.c.b16 %v1291, %v1287
    %v1428 = vpack.c.b16 %v1292, %v1288
    %v1429 = vpack.c.b16 %v1297, %v1293
    %v1430 = vpack.c.b16 %v1298, %v1294
    %v1431 = vpack.c.b16 %v1299, %v1295
    %v1432 = vpack.c.b16 %v1300, %v1296
    %v1433 = vpack.c.b16 %v1305, %v1301
    %v1434 = vpack.c.b16 %v1306, %v1302
    %v1435 = vpack.c.b16 %v1307, %v1303
    %v1436 = vpack.c.b16 %v1308, %v1304
    %v1437 = vpack.c.b16 %v1313, %v1309
    %v1438 = vpack.c.b16 %v1314, %v1310
    %v1439 = vpack.c.b16 %v1315, %v1311
    %v1440 = vpack.c.b16 %v1316, %v1312
    %v1441 = vpack.c.b16 %v1321, %v1317
    %v1442 = vpack.c.b16 %v1322, %v1318
    %v1443 = vpack.c.b16 %v1323, %v1319
    %v1444 = vpack.c.b16 %v1324, %v1320
    %v1445 = vpack.c.b16 %v1329, %v1325
    %v1446 = vpack.c.b16 %v1330, %v1326
    %v1447 = vpack.c.b16 %v1331, %v1327
    %v1448 = vpack.c.b16 %v1332, %v1328
    %v1449 = vpack.c.b16 %v1337, %v1333
    %v1450 = vpack.c.b16 %v1338, %v1334
    %v1451 = vpack.c.b16 %v1339, %v1335
    %v1452 = vpack.c.b16 %v1340, %v1336
    %v1453 = vpack.c.b16 %v1345, %v1341
    %v1454 = vpack.c.b16 %v1346, %v1342
    %v1455 = vpack.c.b16 %v1347, %v1343
    %v1456 = vpack.c.b16 %v1348, %v1344
    %v1457 = vpack.c.b16 %v1353, %v1349
    %v1458 = vpack.c.b16 %v1354, %v1350
    %v1459 = vpack.c.b16 %v1355, %v1351
    %v1460 = vpack.c.b16 %v1356, %v1352
    %v1461 = vpack.c.b16 %v1361, %v1357
    %v1462 = vpack.c.b16 %v1362, %v1358
    %v1463 = vpack.c.b16 %v1363, %v1359
    %v1464 = vpack.c.b16 %v1364, %v1360
    %v1465 = vpack.c.b16 %v1369, %v1365
    %v1466 = vpack.c.b16 %v1370, %v1366
    %v1467 = vpack.c.b16 %v1371, %v1367
    %v1468 = vpack.c.b16 %v1372, %v1368
    %1565 = vmatprep.subr.bf16.mxu0 %v1402
    %1566 = vmatpush1.bf16.msra.mxu0 %v1401
    %1567 = vmatprep.subr.bf16.mxu0 %v1398
    %1568 = vmatpush1.bf16.msra.mxu0 %v1397
    %1569 = vmatprep.subr.bf16.mxu0 %v1394
    %1570 = vmatpush1.bf16.msra.mxu0 %v1393
    %1571 = vmatprep.subr.bf16.mxu0 %v1390
    %1572 = vmatpush1.bf16.msra.mxu0 %v1389
    %1573 = vmatprep.subr.bf16.mxu0 %v1386
    %1574 = vmatpush1.bf16.msra.mxu0 %v1385
    %1575 = vmatprep.subr.bf16.mxu0 %v1382
    %1576 = vmatpush1.bf16.msra.mxu0 %v1381
    %1577 = vmatprep.subr.bf16.mxu0 %v1378
    %1578 = vmatpush1.bf16.msra.mxu0 %v1377
    %1579 = vmatprep.subr.bf16.mxu0 %v1374
    %1580 = vmatpush1.bf16.msra.mxu0 %v1373
    %1581 = vmatprep.subr.bf16.mxu0 %v1434
    %1582 = vmatpush2.bf16.msra.mxu0 %v1433
    %1583 = vmatprep.subr.bf16.mxu0 %v1430
    %1584 = vmatpush2.bf16.msra.mxu0 %v1429
    %1585 = vmatprep.subr.bf16.mxu0 %v1426
    %1586 = vmatpush2.bf16.msra.mxu0 %v1425
    %1587 = vmatprep.subr.bf16.mxu0 %v1422
    %1588 = vmatpush2.bf16.msra.mxu0 %v1421
    %1589 = vmatprep.subr.bf16.mxu0 %v1418
    %1590 = vmatpush2.bf16.msra.mxu0 %v1417
    %1591 = vmatprep.subr.bf16.mxu0 %v1414
    %1592 = vmatpush2.bf16.msra.mxu0 %v1413
    %1593 = vmatprep.subr.bf16.mxu0 %v1410
    %1594 = vmatpush2.bf16.msra.mxu0 %v1409
    %1595 = vmatprep.subr.bf16.mxu0 %v1406
    %1596 = vmatpush2.bf16.msra.mxu0 %v1405
    %1597 = vmatprep.mubr.bf16.mxu0 %v944
    %1598 = vmatmul.mubr.bf16.gmra.mxu0 %v943
    %v1599 = vpop.f32.mrf.mxu0
    %v1600 = vadd.f32 %v1068, %v1599
    %v1601 = vpop.f32.mrf.mxu0
    %v1602 = vadd.f32 %v1072, %v1601
    %v1603 = vpop.f32.mrf.mxu0
    %v1604 = vadd.f32 %v1068, %v1603
    %v1605 = vpop.f32.mrf.mxu0
    %v1606 = vadd.f32 %v1072, %v1605
    %1607 = vmatprep.mubr.bf16.mxu0 %v947
    %1608 = vmatmul.mubr.bf16.gmra.mxu0 %v946
    %v1609 = vpop.f32.mrf.mxu0
    %v1610 = vadd.f32 %v1068, %v1609
    %v1611 = vpop.f32.mrf.mxu0
    %v1612 = vadd.f32 %v1072, %v1611
    %v1613 = vpop.f32.mrf.mxu0
    %v1614 = vadd.f32 %v1068, %v1613
    %v1615 = vpop.f32.mrf.mxu0
    %v1616 = vadd.f32 %v1072, %v1615
    %1617 = vmatprep.mubr.bf16.mxu0 %v950
    %1618 = vmatmul.mubr.bf16.gmra.mxu0 %v949
    %v1619 = vpop.f32.mrf.mxu0
    %v1620 = vadd.f32 %v1068, %v1619
    %v1621 = vpop.f32.mrf.mxu0
    %v1622 = vadd.f32 %v1072, %v1621
    %v1623 = vpop.f32.mrf.mxu0
    %v1624 = vadd.f32 %v1068, %v1623
    %v1625 = vpop.f32.mrf.mxu0
    %v1626 = vadd.f32 %v1072, %v1625
    %1627 = vmatprep.mubr.bf16.mxu0 %v953
    %1628 = vmatmul.mubr.bf16.gmra.mxu0 %v952
    %v1629 = vpop.f32.mrf.mxu0
    %v1630 = vadd.f32 %v1068, %v1629
    %v1631 = vpop.f32.mrf.mxu0
    %v1632 = vadd.f32 %v1072, %v1631
    %v1633 = vpop.f32.mrf.mxu0
    %v1634 = vadd.f32 %v1068, %v1633
    %v1635 = vpop.f32.mrf.mxu0
    %v1636 = vadd.f32 %v1072, %v1635
    %1637 = vmatprep.mubr.bf16.mxu0 %v956
    %1638 = vmatmul.mubr.bf16.gmra.mxu0 %v955
    %v1639 = vpop.f32.mrf.mxu0
    %v1640 = vadd.f32 %v1068, %v1639
    %v1641 = vpop.f32.mrf.mxu0
    %v1642 = vadd.f32 %v1072, %v1641
    %v1643 = vpop.f32.mrf.mxu0
    %v1644 = vadd.f32 %v1068, %v1643
    %v1645 = vpop.f32.mrf.mxu0
    %v1646 = vadd.f32 %v1072, %v1645
    %1647 = vmatprep.mubr.bf16.mxu0 %v959
    %1648 = vmatmul.mubr.bf16.gmra.mxu0 %v958
    %v1649 = vpop.f32.mrf.mxu0
    %v1650 = vadd.f32 %v1068, %v1649
    %v1651 = vpop.f32.mrf.mxu0
    %v1652 = vadd.f32 %v1072, %v1651
    %v1653 = vpop.f32.mrf.mxu0
    %v1654 = vadd.f32 %v1068, %v1653
    %v1655 = vpop.f32.mrf.mxu0
    %v1656 = vadd.f32 %v1072, %v1655
    %1657 = vmatprep.mubr.bf16.mxu0 %v962
    %1658 = vmatmul.mubr.bf16.gmra.mxu0 %v961
    %v1659 = vpop.f32.mrf.mxu0
    %v1660 = vadd.f32 %v1068, %v1659
    %v1661 = vpop.f32.mrf.mxu0
    %v1662 = vadd.f32 %v1072, %v1661
    %v1663 = vpop.f32.mrf.mxu0
    %v1664 = vadd.f32 %v1068, %v1663
    %v1665 = vpop.f32.mrf.mxu0
    %v1666 = vadd.f32 %v1072, %v1665
    %1667 = vmatprep.mubr.bf16.mxu0 %v965
    %1668 = vmatmul.mubr.bf16.gmra.mxu0 %v964
    %v1669 = vpop.f32.mrf.mxu0
    %v1670 = vadd.f32 %v1068, %v1669
    %v1671 = vpop.f32.mrf.mxu0
    %v1672 = vadd.f32 %v1072, %v1671
    %v1673 = vpop.f32.mrf.mxu0
    %v1674 = vadd.f32 %v1068, %v1673
    %v1675 = vpop.f32.mrf.mxu0
    %v1676 = vadd.f32 %v1072, %v1675
    %1677 = vdwg.mxu0
    %1678 = vmatprep.subr.bf16.mxu0 %v1466
    %1679 = vmatpush1.bf16.msra.mxu0 %v1465
    %1680 = vmatprep.subr.bf16.mxu0 %v1462
    %1681 = vmatpush1.bf16.msra.mxu0 %v1461
    %1682 = vmatprep.subr.bf16.mxu0 %v1458
    %1683 = vmatpush1.bf16.msra.mxu0 %v1457
    %1684 = vmatprep.subr.bf16.mxu0 %v1454
    %1685 = vmatpush1.bf16.msra.mxu0 %v1453
    %1686 = vmatprep.subr.bf16.mxu0 %v1450
    %1687 = vmatpush1.bf16.msra.mxu0 %v1449
    %1688 = vmatprep.subr.bf16.mxu0 %v1446
    %1689 = vmatpush1.bf16.msra.mxu0 %v1445
    %1690 = vmatprep.subr.bf16.mxu0 %v1442
    %1691 = vmatpush1.bf16.msra.mxu0 %v1441
    %1692 = vmatprep.subr.bf16.mxu0 %v1438
    %1693 = vmatpush1.bf16.msra.mxu0 %v1437
    %1694 = vmatprep.subr.bf16.mxu0 0
    %1695 = vmatpush2.bf16.msra.mxu0 0
    %1696 = vmatprep.subr.bf16.mxu0 0
    %1697 = vmatpush2.bf16.msra.mxu0 0
    %1698 = vmatprep.subr.bf16.mxu0 0
    %1699 = vmatpush2.bf16.msra.mxu0 0
    %1700 = vmatprep.subr.bf16.mxu0 0
    %1701 = vmatpush2.bf16.msra.mxu0 0
    %1702 = vmatprep.subr.bf16.mxu0 0
    %1703 = vmatpush2.bf16.msra.mxu0 0
    %1704 = vmatprep.subr.bf16.mxu0 0
    %1705 = vmatpush2.bf16.msra.mxu0 0
    %1706 = vmatprep.subr.bf16.mxu0 0
    %1707 = vmatpush2.bf16.msra.mxu0 0
    %1708 = vmatprep.subr.bf16.mxu0 0
    %1709 = vmatpush2.bf16.msra.mxu0 0
    %1710 = vmatprep.mubr.bf16.mxu0 0
    %1711 = vmatmul.mubr.bf16.gmra.mxu0 %v945
    %v1712 = vpop.f32.mrf.mxu0
    %v1713 = vadd.f32 %v1600, %v1712
    %v1714 = vpop.f32.mrf.mxu0
    %v1715 = vadd.f32 %v1602, %v1714
    %v1716 = vpop.f32.mrf.mxu0
    %v1717 = vadd.f32 %v1604, %v1716
    %v1718 = vpop.f32.mrf.mxu0
    %v1719 = vadd.f32 %v1606, %v1718
    %1720 = vmatprep.mubr.bf16.mxu0 0
    %1721 = vmatmul.mubr.bf16.gmra.mxu0 %v948
    %v1722 = vpop.f32.mrf.mxu0
    %v1723 = vadd.f32 %v1610, %v1722
    %v1724 = vpop.f32.mrf.mxu0
    %v1725 = vadd.f32 %v1612, %v1724
    %v1726 = vpop.f32.mrf.mxu0
    %v1727 = vadd.f32 %v1614, %v1726
    %v1728 = vpop.f32.mrf.mxu0
    %v1729 = vadd.f32 %v1616, %v1728
    %1730 = vmatprep.mubr.bf16.mxu0 0
    %1731 = vmatmul.mubr.bf16.gmra.mxu0 %v951
    %v1732 = vpop.f32.mrf.mxu0
    %v1733 = vadd.f32 %v1620, %v1732
    %v1734 = vpop.f32.mrf.mxu0
    %v1735 = vadd.f32 %v1622, %v1734
    %v1736 = vpop.f32.mrf.mxu0
    %v1737 = vadd.f32 %v1624, %v1736
    %v1738 = vpop.f32.mrf.mxu0
    %v1739 = vadd.f32 %v1626, %v1738
    %1740 = vmatprep.mubr.bf16.mxu0 0
    %1741 = vmatmul.mubr.bf16.gmra.mxu0 %v954
    %v1742 = vpop.f32.mrf.mxu0
    %v1743 = vadd.f32 %v1630, %v1742
    %v1744 = vpop.f32.mrf.mxu0
    %v1745 = vadd.f32 %v1632, %v1744
    %v1746 = vpop.f32.mrf.mxu0
    %v1747 = vadd.f32 %v1634, %v1746
    %v1748 = vpop.f32.mrf.mxu0
    %v1749 = vadd.f32 %v1636, %v1748
    %1750 = vmatprep.mubr.bf16.mxu0 0
    %1751 = vmatmul.mubr.bf16.gmra.mxu0 %v957
    %v1752 = vpop.f32.mrf.mxu0
    %v1753 = vadd.f32 %v1640, %v1752
    %v1754 = vpop.f32.mrf.mxu0
    %v1755 = vadd.f32 %v1642, %v1754
    %v1756 = vpop.f32.mrf.mxu0
    %v1757 = vadd.f32 %v1644, %v1756
    %v1758 = vpop.f32.mrf.mxu0
    %v1759 = vadd.f32 %v1646, %v1758
    %1760 = vmatprep.mubr.bf16.mxu0 0
    %1761 = vmatmul.mubr.bf16.gmra.mxu0 %v960
    %v1762 = vpop.f32.mrf.mxu0
    %v1763 = vadd.f32 %v1650, %v1762
    %v1764 = vpop.f32.mrf.mxu0
    %v1765 = vadd.f32 %v1652, %v1764
    %v1766 = vpop.f32.mrf.mxu0
    %v1767 = vadd.f32 %v1654, %v1766
    %v1768 = vpop.f32.mrf.mxu0
    %v1769 = vadd.f32 %v1656, %v1768
    %1770 = vmatprep.mubr.bf16.mxu0 0
    %1771 = vmatmul.mubr.bf16.gmra.mxu0 %v963
    %v1772 = vpop.f32.mrf.mxu0
    %v1773 = vadd.f32 %v1660, %v1772
    %v1774 = vpop.f32.mrf.mxu0
    %v1775 = vadd.f32 %v1662, %v1774
    %v1776 = vpop.f32.mrf.mxu0
    %v1777 = vadd.f32 %v1664, %v1776
    %v1778 = vpop.f32.mrf.mxu0
    %v1779 = vadd.f32 %v1666, %v1778
    %1780 = vmatprep.mubr.bf16.mxu0 0
    %1781 = vmatmul.mubr.bf16.gmra.mxu0 %v966
    %v1782 = vpop.f32.mrf.mxu0
    %v1783 = vadd.f32 %v1670, %v1782
    %v1784 = vpop.f32.mrf.mxu0
    %v1785 = vadd.f32 %v1672, %v1784
    %v1786 = vpop.f32.mrf.mxu0
    %v1787 = vadd.f32 %v1674, %v1786
    %v1788 = vpop.f32.mrf.mxu0
    %v1789 = vadd.f32 %v1676, %v1788
    %1790 = vdwg.mxu0
    %1791 = vmatprep.subr.bf16.mxu0 %v1404
    %1792 = vmatpush1.bf16.msra.mxu0 %v1403
    %1793 = vmatprep.subr.bf16.mxu0 %v1400
    %1794 = vmatpush1.bf16.msra.mxu0 %v1399
    %1795 = vmatprep.subr.bf16.mxu0 %v1396
    %1796 = vmatpush1.bf16.msra.mxu0 %v1395
    %1797 = vmatprep.subr.bf16.mxu0 %v1392
    %1798 = vmatpush1.bf16.msra.mxu0 %v1391
    %1799 = vmatprep.subr.bf16.mxu0 %v1388
    %1800 = vmatpush1.bf16.msra.mxu0 %v1387
    %1801 = vmatprep.subr.bf16.mxu0 %v1384
    %1802 = vmatpush1.bf16.msra.mxu0 %v1383
    %1803 = vmatprep.subr.bf16.mxu0 %v1380
    %1804 = vmatpush1.bf16.msra.mxu0 %v1379
    %1805 = vmatprep.subr.bf16.mxu0 %v1376
    %1806 = vmatpush1.bf16.msra.mxu0 %v1375
    %1807 = vmatprep.subr.bf16.mxu0 %v1436
    %1808 = vmatpush2.bf16.msra.mxu0 %v1435
    %1809 = vmatprep.subr.bf16.mxu0 %v1432
    %1810 = vmatpush2.bf16.msra.mxu0 %v1431
    %1811 = vmatprep.subr.bf16.mxu0 %v1428
    %1812 = vmatpush2.bf16.msra.mxu0 %v1427
    %1813 = vmatprep.subr.bf16.mxu0 %v1424
    %1814 = vmatpush2.bf16.msra.mxu0 %v1423
    %1815 = vmatprep.subr.bf16.mxu0 %v1420
    %1816 = vmatpush2.bf16.msra.mxu0 %v1419
    %1817 = vmatprep.subr.bf16.mxu0 %v1416
    %1818 = vmatpush2.bf16.msra.mxu0 %v1415
    %1819 = vmatprep.subr.bf16.mxu0 %v1412
    %1820 = vmatpush2.bf16.msra.mxu0 %v1411
    %1821 = vmatprep.subr.bf16.mxu0 %v1408
    %1822 = vmatpush2.bf16.msra.mxu0 %v1407
    %1823 = vmatprep.mubr.bf16.mxu0 %v944
    %1824 = vmatmul.mubr.bf16.gmra.mxu0 %v943
    %v1825 = vpop.f32.mrf.mxu0
    %v1826 = vadd.f32 %v1076, %v1825
    %v1827 = vpop.f32.mrf.mxu0
    %v1828 = vadd.f32 %v1080, %v1827
    %v1829 = vpop.f32.mrf.mxu0
    %v1830 = vadd.f32 %v1076, %v1829
    %v1831 = vpop.f32.mrf.mxu0
    %v1832 = vadd.f32 %v1080, %v1831
    %1833 = vmatprep.mubr.bf16.mxu0 %v947
    %1834 = vmatmul.mubr.bf16.gmra.mxu0 %v946
    %v1835 = vpop.f32.mrf.mxu0
    %v1836 = vadd.f32 %v1076, %v1835
    %v1837 = vpop.f32.mrf.mxu0
    %v1838 = vadd.f32 %v1080, %v1837
    %v1839 = vpop.f32.mrf.mxu0
    %v1840 = vadd.f32 %v1076, %v1839
    %v1841 = vpop.f32.mrf.mxu0
    %v1842 = vadd.f32 %v1080, %v1841
    %1843 = vmatprep.mubr.bf16.mxu0 %v950
    %1844 = vmatmul.mubr.bf16.gmra.mxu0 %v949
    %v1845 = vpop.f32.mrf.mxu0
    %v1846 = vadd.f32 %v1076, %v1845
    %v1847 = vpop.f32.mrf.mxu0
    %v1848 = vadd.f32 %v1080, %v1847
    %v1849 = vpop.f32.mrf.mxu0
    %v1850 = vadd.f32 %v1076, %v1849
    %v1851 = vpop.f32.mrf.mxu0
    %v1852 = vadd.f32 %v1080, %v1851
    %1853 = vmatprep.mubr.bf16.mxu0 %v953
    %1854 = vmatmul.mubr.bf16.gmra.mxu0 %v952
    %v1855 = vpop.f32.mrf.mxu0
    %v1856 = vadd.f32 %v1076, %v1855
    %v1857 = vpop.f32.mrf.mxu0
    %v1858 = vadd.f32 %v1080, %v1857
    %v1859 = vpop.f32.mrf.mxu0
    %v1860 = vadd.f32 %v1076, %v1859
    %v1861 = vpop.f32.mrf.mxu0
    %v1862 = vadd.f32 %v1080, %v1861
    %1863 = vmatprep.mubr.bf16.mxu0 %v956
    %1864 = vmatmul.mubr.bf16.gmra.mxu0 %v955
    %v1865 = vpop.f32.mrf.mxu0
    %v1866 = vadd.f32 %v1076, %v1865
    %v1867 = vpop.f32.mrf.mxu0
    %v1868 = vadd.f32 %v1080, %v1867
    %v1869 = vpop.f32.mrf.mxu0
    %v1870 = vadd.f32 %v1076, %v1869
    %v1871 = vpop.f32.mrf.mxu0
    %v1872 = vadd.f32 %v1080, %v1871
    %1873 = vmatprep.mubr.bf16.mxu0 %v959
    %1874 = vmatmul.mubr.bf16.gmra.mxu0 %v958
    %v1875 = vpop.f32.mrf.mxu0
    %v1876 = vadd.f32 %v1076, %v1875
    %v1877 = vpop.f32.mrf.mxu0
    %v1878 = vadd.f32 %v1080, %v1877
    %v1879 = vpop.f32.mrf.mxu0
    %v1880 = vadd.f32 %v1076, %v1879
    %v1881 = vpop.f32.mrf.mxu0
    %v1882 = vadd.f32 %v1080, %v1881
    %1883 = vmatprep.mubr.bf16.mxu0 %v962
    %1884 = vmatmul.mubr.bf16.gmra.mxu0 %v961
    %v1885 = vpop.f32.mrf.mxu0
    %v1886 = vadd.f32 %v1076, %v1885
    %v1887 = vpop.f32.mrf.mxu0
    %v1888 = vadd.f32 %v1080, %v1887
    %v1889 = vpop.f32.mrf.mxu0
    %v1890 = vadd.f32 %v1076, %v1889
    %v1891 = vpop.f32.mrf.mxu0
    %v1892 = vadd.f32 %v1080, %v1891
    %1893 = vmatprep.mubr.bf16.mxu0 %v965
    %1894 = vmatmul.mubr.bf16.gmra.mxu0 %v964
    %v1895 = vpop.f32.mrf.mxu0
    %v1896 = vadd.f32 %v1076, %v1895
    %v1897 = vpop.f32.mrf.mxu0
    %v1898 = vadd.f32 %v1080, %v1897
    %v1899 = vpop.f32.mrf.mxu0
    %v1900 = vadd.f32 %v1076, %v1899
    %v1901 = vpop.f32.mrf.mxu0
    %v1902 = vadd.f32 %v1080, %v1901
    %1903 = vdwg.mxu0
    %1904 = vmatprep.subr.bf16.mxu0 %v1468
    %1905 = vmatpush1.bf16.msra.mxu0 %v1467
    %1906 = vmatprep.subr.bf16.mxu0 %v1464
    %1907 = vmatpush1.bf16.msra.mxu0 %v1463
    %1908 = vmatprep.subr.bf16.mxu0 %v1460
    %1909 = vmatpush1.bf16.msra.mxu0 %v1459
    %1910 = vmatprep.subr.bf16.mxu0 %v1456
    %1911 = vmatpush1.bf16.msra.mxu0 %v1455
    %1912 = vmatprep.subr.bf16.mxu0 %v1452
    %1913 = vmatpush1.bf16.msra.mxu0 %v1451
    %1914 = vmatprep.subr.bf16.mxu0 %v1448
    %1915 = vmatpush1.bf16.msra.mxu0 %v1447
    %1916 = vmatprep.subr.bf16.mxu0 %v1444
    %1917 = vmatpush1.bf16.msra.mxu0 %v1443
    %1918 = vmatprep.subr.bf16.mxu0 %v1440
    %1919 = vmatpush1.bf16.msra.mxu0 %v1439
    %1920 = vmatprep.subr.bf16.mxu0 0
    %1921 = vmatpush2.bf16.msra.mxu0 0
    %1922 = vmatprep.subr.bf16.mxu0 0
    %1923 = vmatpush2.bf16.msra.mxu0 0
    %1924 = vmatprep.subr.bf16.mxu0 0
    %1925 = vmatpush2.bf16.msra.mxu0 0
    %1926 = vmatprep.subr.bf16.mxu0 0
    %1927 = vmatpush2.bf16.msra.mxu0 0
    %1928 = vmatprep.subr.bf16.mxu0 0
    %1929 = vmatpush2.bf16.msra.mxu0 0
    %1930 = vmatprep.subr.bf16.mxu0 0
    %1931 = vmatpush2.bf16.msra.mxu0 0
    %1932 = vmatprep.subr.bf16.mxu0 0
    %1933 = vmatpush2.bf16.msra.mxu0 0
    %1934 = vmatprep.subr.bf16.mxu0 0
    %1935 = vmatpush2.bf16.msra.mxu0 0
    %1936 = vmatprep.mubr.bf16.mxu0 0
    %1937 = vmatmul.mubr.bf16.gmra.mxu0 %v945
    %v1938 = vpop.f32.mrf.mxu0
    %v1939 = vadd.f32 %v1826, %v1938
    %v1940 = vpop.f32.mrf.mxu0
    %v1941 = vadd.f32 %v1828, %v1940
    %v1942 = vpop.f32.mrf.mxu0
    %v1943 = vadd.f32 %v1830, %v1942
    %v1944 = vpop.f32.mrf.mxu0
    %v1945 = vadd.f32 %v1832, %v1944
    %1946 = vmatprep.mubr.bf16.mxu0 0
    %1947 = vmatmul.mubr.bf16.gmra.mxu0 %v948
    %v1948 = vpop.f32.mrf.mxu0
    %v1949 = vadd.f32 %v1836, %v1948
    %v1950 = vpop.f32.mrf.mxu0
    %v1951 = vadd.f32 %v1838, %v1950
    %v1952 = vpop.f32.mrf.mxu0
    %v1953 = vadd.f32 %v1840, %v1952
    %v1954 = vpop.f32.mrf.mxu0
    %v1955 = vadd.f32 %v1842, %v1954
    %1956 = vmatprep.mubr.bf16.mxu0 0
    %1957 = vmatmul.mubr.bf16.gmra.mxu0 %v951
    %v1958 = vpop.f32.mrf.mxu0
    %v1959 = vadd.f32 %v1846, %v1958
    %v1960 = vpop.f32.mrf.mxu0
    %v1961 = vadd.f32 %v1848, %v1960
    %v1962 = vpop.f32.mrf.mxu0
    %v1963 = vadd.f32 %v1850, %v1962
    %v1964 = vpop.f32.mrf.mxu0
    %v1965 = vadd.f32 %v1852, %v1964
    %1966 = vmatprep.mubr.bf16.mxu0 0
    %1967 = vmatmul.mubr.bf16.gmra.mxu0 %v954
    %v1968 = vpop.f32.mrf.mxu0
    %v1969 = vadd.f32 %v1856, %v1968
    %v1970 = vpop.f32.mrf.mxu0
    %v1971 = vadd.f32 %v1858, %v1970
    %v1972 = vpop.f32.mrf.mxu0
    %v1973 = vadd.f32 %v1860, %v1972
    %v1974 = vpop.f32.mrf.mxu0
    %v1975 = vadd.f32 %v1862, %v1974
    %1976 = vmatprep.mubr.bf16.mxu0 0
    %1977 = vmatmul.mubr.bf16.gmra.mxu0 %v957
    %v1978 = vpop.f32.mrf.mxu0
    %v1979 = vadd.f32 %v1866, %v1978
    %v1980 = vpop.f32.mrf.mxu0
    %v1981 = vadd.f32 %v1868, %v1980
    %v1982 = vpop.f32.mrf.mxu0
    %v1983 = vadd.f32 %v1870, %v1982
    %v1984 = vpop.f32.mrf.mxu0
    %v1985 = vadd.f32 %v1872, %v1984
    %1986 = vmatprep.mubr.bf16.mxu0 0
    %1987 = vmatmul.mubr.bf16.gmra.mxu0 %v960
    %v1988 = vpop.f32.mrf.mxu0
    %v1989 = vadd.f32 %v1876, %v1988
    %v1990 = vpop.f32.mrf.mxu0
    %v1991 = vadd.f32 %v1878, %v1990
    %v1992 = vpop.f32.mrf.mxu0
    %v1993 = vadd.f32 %v1880, %v1992
    %v1994 = vpop.f32.mrf.mxu0
    %v1995 = vadd.f32 %v1882, %v1994
    %1996 = vmatprep.mubr.bf16.mxu0 0
    %1997 = vmatmul.mubr.bf16.gmra.mxu0 %v963
    %v1998 = vpop.f32.mrf.mxu0
    %v1999 = vadd.f32 %v1886, %v1998
    %v2000 = vpop.f32.mrf.mxu0
    %v2001 = vadd.f32 %v1888, %v2000
    %v2002 = vpop.f32.mrf.mxu0
    %v2003 = vadd.f32 %v1890, %v2002
    %v2004 = vpop.f32.mrf.mxu0
    %v2005 = vadd.f32 %v1892, %v2004
    %2006 = vmatprep.mubr.bf16.mxu0 0
    %2007 = vmatmul.mubr.bf16.gmra.mxu0 %v966
    %v2008 = vpop.f32.mrf.mxu0
    %v2009 = vadd.f32 %v1896, %v2008
    %v2010 = vpop.f32.mrf.mxu0
    %v2011 = vadd.f32 %v1898, %v2010
    %v2012 = vpop.f32.mrf.mxu0
    %v2013 = vadd.f32 %v1900, %v2012
    %v2014 = vpop.f32.mrf.mxu0
    %v2015 = vadd.f32 %v1902, %v2014
    %2016 = vdwg.mxu0
    %v2017 = vmax.f32 %v1713, 0.0
    %v2018 = vmax.f32 %v1715, 0.0
    %v2019 = vmax.f32 %v1939, 0.0
    %v2020 = vmax.f32 %v1941, 0.0
    %v2021 = vmax.f32 %v1717, 0.0
    %v2022 = vmax.f32 %v1719, 0.0
    %v2023 = vmax.f32 %v1943, 0.0
    %v2024 = vmax.f32 %v1945, 0.0
    %v2025 = vmax.f32 %v1723, 0.0
    %v2026 = vmax.f32 %v1725, 0.0
    %v2027 = vmax.f32 %v1949, 0.0
    %v2028 = vmax.f32 %v1951, 0.0
    %v2029 = vmax.f32 %v1727, 0.0
    %v2030 = vmax.f32 %v1729, 0.0
    %v2031 = vmax.f32 %v1953, 0.0
    %v2032 = vmax.f32 %v1955, 0.0
    %v2033 = vmax.f32 %v1733, 0.0
    %v2034 = vmax.f32 %v1735, 0.0
    %v2035 = vmax.f32 %v1959, 0.0
    %v2036 = vmax.f32 %v1961, 0.0
    %v2037 = vmax.f32 %v1737, 0.0
    %v2038 = vmax.f32 %v1739, 0.0
    %v2039 = vmax.f32 %v1963, 0.0
    %v2040 = vmax.f32 %v1965, 0.0
    %v2041 = vmax.f32 %v1743, 0.0
    %v2042 = vmax.f32 %v1745, 0.0
    %v2043 = vmax.f32 %v1969, 0.0
    %v2044 = vmax.f32 %v1971, 0.0
    %v2045 = vmax.f32 %v1747, 0.0
    %v2046 = vmax.f32 %v1749, 0.0
    %v2047 = vmax.f32 %v1973, 0.0
    %v2048 = vmax.f32 %v1975, 0.0
    %v2049 = vmax.f32 %v1753, 0.0
    %v2050 = vmax.f32 %v1755, 0.0
    %v2051 = vmax.f32 %v1979, 0.0
    %v2052 = vmax.f32 %v1981, 0.0
    %v2053 = vmax.f32 %v1757, 0.0
    %v2054 = vmax.f32 %v1759, 0.0
    %v2055 = vmax.f32 %v1983, 0.0
    %v2056 = vmax.f32 %v1985, 0.0
    %v2057 = vmax.f32 %v1763, 0.0
    %v2058 = vmax.f32 %v1765, 0.0
    %v2059 = vmax.f32 %v1989, 0.0
    %v2060 = vmax.f32 %v1991, 0.0
    %v2061 = vmax.f32 %v1767, 0.0
    %v2062 = vmax.f32 %v1769, 0.0
    %v2063 = vmax.f32 %v1993, 0.0
    %v2064 = vmax.f32 %v1995, 0.0
    %v2065 = vmax.f32 %v1773, 0.0
    %v2066 = vmax.f32 %v1775, 0.0
    %v2067 = vmax.f32 %v1999, 0.0
    %v2068 = vmax.f32 %v2001, 0.0
    %v2069 = vmax.f32 %v1777, 0.0
    %v2070 = vmax.f32 %v1779, 0.0
    %v2071 = vmax.f32 %v2003, 0.0
    %v2072 = vmax.f32 %v2005, 0.0
    %v2073 = vmax.f32 %v1783, 0.0
    %v2074 = vmax.f32 %v1785, 0.0
    %v2075 = vmax.f32 %v2009, 0.0
    %v2076 = vmax.f32 %v2011, 0.0
    %v2077 = vmax.f32 %v1787, 0.0
    %v2078 = vmax.f32 %v1789, 0.0
    %v2079 = vmax.f32 %v2013, 0.0
    %v2080 = vmax.f32 %v2015, 0.0
    %v2081 = vpack.c.bf16 %v2021, %v2017
    %v2082 = vpack.c.bf16 %v2022, %v2018
    %v2083 = vpack.c.bf16 %v2023, %v2019
    %v2084 = vpack.c.bf16 %v2024, %v2020
    %v2085 = vpack.c.bf16 %v2029, %v2025
    %v2086 = vpack.c.bf16 %v2030, %v2026
    %v2087 = vpack.c.bf16 %v2031, %v2027
    %v2088 = vpack.c.bf16 %v2032, %v2028
    %v2089 = vpack.c.bf16 %v2037, %v2033
    %v2090 = vpack.c.bf16 %v2038, %v2034
    %v2091 = vpack.c.bf16 %v2039, %v2035
    %v2092 = vpack.c.bf16 %v2040, %v2036
    %v2093 = vpack.c.bf16 %v2045, %v2041
    %v2094 = vpack.c.bf16 %v2046, %v2042
    %v2095 = vpack.c.bf16 %v2047, %v2043
    %v2096 = vpack.c.bf16 %v2048, %v2044
    %v2097 = vpack.c.bf16 %v2053, %v2049
    %v2098 = vpack.c.bf16 %v2054, %v2050
    %v2099 = vpack.c.bf16 %v2055, %v2051
    %v2100 = vpack.c.bf16 %v2056, %v2052
    %v2101 = vpack.c.bf16 %v2061, %v2057
    %v2102 = vpack.c.bf16 %v2062, %v2058
    %v2103 = vpack.c.bf16 %v2063, %v2059
    %v2104 = vpack.c.bf16 %v2064, %v2060
    %v2105 = vpack.c.bf16 %v2069, %v2065
    %v2106 = vpack.c.bf16 %v2070, %v2066
    %v2107 = vpack.c.bf16 %v2071, %v2067
    %v2108 = vpack.c.bf16 %v2072, %v2068
    %v2109 = vpack.c.bf16 %v2077, %v2073
    %v2110 = vpack.c.bf16 %v2078, %v2074
    %v2111 = vpack.c.bf16 %v2079, %v2075
    %v2112 = vpack.c.bf16 %v2080, %v2076
    %v2113 = vld [vmem:[%s6 + $0x9] sm:$0x1]
    %v2114 = vld [vmem:[#allocation7] sm:$0xf]
    %v2115 = vld [vmem:[#allocation7 + $0x4] sm:$0xf]
    %v2116 = vld [vmem:[#allocation7 + $0x8] sm:$0xf]
    %v2117 = vld [vmem:[#allocation7 + $0xc] sm:$0xf]
    %v2118 = vld [vmem:[#allocation7 + $0x10] sm:$0xf]
    %v2119 = vld [vmem:[#allocation7 + $0x14] sm:$0xf]
    %v2120 = vld [vmem:[#allocation7 + $0x18] sm:$0xf]
    %v2121 = vld [vmem:[#allocation7 + $0x1c] sm:$0xf]
    %v2122 = vld [vmem:[#allocation7 + $0x20] sm:$0xf]
    %v2123 = vld [vmem:[#allocation7 + $0x24] sm:$0xf]
    %v2124 = vld [vmem:[#allocation7 + $0x28] sm:$0xf]
    %v2125 = vld [vmem:[#allocation7 + $0x2c] sm:$0xf]
    %v2126 = vld [vmem:[#allocation7 + $0x30] sm:$0xf]
    %v2127 = vld [vmem:[#allocation7 + $0x34] sm:$0xf]
    %v2128 = vld [vmem:[#allocation7 + $0x38] sm:$0xf]
    %v2129 = vld [vmem:[#allocation7 + $0x3c] sm:$0xf]
    %v2130 = vld [vmem:[#allocation7 + $0x40] sm:$0xf]
    %v2131 = vld [vmem:[#allocation7 + $0x44] sm:$0xf]
    %v2132 = vld [vmem:[#allocation7 + $0x48] sm:$0xf]
    %v2133 = vld [vmem:[#allocation7 + $0x4c] sm:$0xf]
    %v2134 = vld [vmem:[#allocation7 + $0x50] sm:$0xf]
    %v2135 = vld [vmem:[#allocation7 + $0x54] sm:$0xf]
    %v2136 = vld [vmem:[#allocation7 + $0x58] sm:$0xf]
    %v2137 = vld [vmem:[#allocation7 + $0x5c] sm:$0xf]
    %v2138 = vld [vmem:[#allocation7 + $0x60] sm:$0xf]
    %v2139 = vld [vmem:[#allocation7 + $0x64] sm:$0xf]
    %v2140 = vld [vmem:[#allocation7 + $0x68] sm:$0xf]
    %v2141 = vld [vmem:[#allocation7 + $0x6c] sm:$0xf]
    %v2142 = vld [vmem:[#allocation7 + $0x70] sm:$0xf]
    %v2143 = vld [vmem:[#allocation7 + $0x74] sm:$0xf]
    %v2144 = vld [vmem:[#allocation7 + $0x78] sm:$0xf]
    %v2145 = vld [vmem:[#allocation7 + $0x7c] sm:$0xf]
    %v2146 = vld [vmem:[#allocation7 + $0x80] sm:$0xf]
    %v2147 = vld [vmem:[#allocation7 + $0x84] sm:$0xf]
    %v2148 = vld [vmem:[#allocation7 + $0x88] sm:$0xf]
    %v2149 = vld [vmem:[#allocation7 + $0x8c] sm:$0xf]
    %v2150 = vld [vmem:[#allocation7 + $0x90] sm:$0xf]
    %v2151 = vld [vmem:[#allocation7 + $0x94] sm:$0xf]
    %v2152 = vld [vmem:[#allocation7 + $0x98] sm:$0xf]
    %v2153 = vld [vmem:[#allocation7 + $0x9c] sm:$0xf]
    %v2154 = vld [vmem:[#allocation7 + $0xa0] sm:$0xf]
    %v2155 = vld [vmem:[#allocation7 + $0xa4] sm:$0xf]
    %v2156 = vld [vmem:[#allocation7 + $0xa8] sm:$0xf]
    %v2157 = vld [vmem:[#allocation7 + $0xac] sm:$0xf]
    %v2158 = vld [vmem:[#allocation7 + $0xb0] sm:$0xf]
    %v2159 = vld [vmem:[#allocation7 + $0xb4] sm:$0xf]
    %v2160 = vld [vmem:[#allocation7 + $0xb8] sm:$0xf]
    %v2161 = vld [vmem:[#allocation7 + $0xbc] sm:$0xf]
    %v2162 = vld [vmem:[#allocation7 + $0xc0] sm:$0xf]
    %v2163 = vld [vmem:[#allocation7 + $0xc4] sm:$0xf]
    %v2164 = vld [vmem:[#allocation7 + $0xc8] sm:$0xf]
    %v2165 = vld [vmem:[#allocation7 + $0xcc] sm:$0xf]
    %v2166 = vld [vmem:[#allocation7 + $0xd0] sm:$0xf]
    %v2167 = vld [vmem:[#allocation7 + $0xd4] sm:$0xf]
    %v2168 = vld [vmem:[#allocation7 + $0xd8] sm:$0xf]
    %v2169 = vld [vmem:[#allocation7 + $0xdc] sm:$0xf]
    %v2170 = vld [vmem:[#allocation7 + $0xe0] sm:$0xf]
    %v2171 = vld [vmem:[#allocation7 + $0xe4] sm:$0xf]
    %v2172 = vld [vmem:[#allocation7 + $0xe8] sm:$0xf]
    %v2173 = vld [vmem:[#allocation7 + $0xec] sm:$0xf]
    %v2174 = vld [vmem:[#allocation7 + $0xf0] sm:$0xf]
    %v2175 = vld [vmem:[#allocation7 + $0xf4] sm:$0xf]
    %v2176 = vld [vmem:[#allocation7 + $0xf8] sm:$0xf]
    %v2177 = vld [vmem:[#allocation7 + $0xfc] sm:$0xf]
    %v2179 = vlaneseq
    %v2180 = vshrl.u32 %v2179, 7
    %v2181 = vsub.s32 0, %v2180
    %v2182 = vrot.slane %v2113, %v2181
    %v2248 = vunpack.c.l.b16 %v2114
    %v2249 = vunpack.c.l.b16 %v2115
    %v2250 = vunpack.c.l.b16 %v2116
    %v2251 = vunpack.c.l.b16 %v2117
    %v2252 = vunpack.c.l.b16 %v2118
    %v2253 = vunpack.c.l.b16 %v2119
    %v2254 = vunpack.c.l.b16 %v2120
    %v2255 = vunpack.c.l.b16 %v2121
    %v2256 = vunpack.c.l.b16 %v2122
    %v2257 = vunpack.c.l.b16 %v2123
    %v2258 = vunpack.c.l.b16 %v2124
    %v2259 = vunpack.c.l.b16 %v2125
    %v2260 = vunpack.c.l.b16 %v2126
    %v2261 = vunpack.c.l.b16 %v2127
    %v2262 = vunpack.c.l.b16 %v2128
    %v2263 = vunpack.c.l.b16 %v2129
    %v2264 = vunpack.c.l.b16 %v2130
    %v2265 = vunpack.c.l.b16 %v2131
    %v2266 = vunpack.c.l.b16 %v2132
    %v2267 = vunpack.c.l.b16 %v2133
    %v2268 = vunpack.c.l.b16 %v2134
    %v2269 = vunpack.c.l.b16 %v2135
    %v2270 = vunpack.c.l.b16 %v2136
    %v2271 = vunpack.c.l.b16 %v2137
    %v2272 = vunpack.c.l.b16 %v2138
    %v2273 = vunpack.c.l.b16 %v2139
    %v2274 = vunpack.c.l.b16 %v2140
    %v2275 = vunpack.c.l.b16 %v2141
    %v2276 = vunpack.c.l.b16 %v2142
    %v2277 = vunpack.c.l.b16 %v2143
    %v2278 = vunpack.c.l.b16 %v2144
    %v2279 = vunpack.c.l.b16 %v2145
    %v2280 = vunpack.c.l.b16 %v2146
    %v2281 = vunpack.c.l.b16 %v2147
    %v2282 = vunpack.c.l.b16 %v2148
    %v2283 = vunpack.c.l.b16 %v2149
    %v2284 = vunpack.c.l.b16 %v2150
    %v2285 = vunpack.c.l.b16 %v2151
    %v2286 = vunpack.c.l.b16 %v2152
    %v2287 = vunpack.c.l.b16 %v2153
    %v2288 = vunpack.c.l.b16 %v2154
    %v2289 = vunpack.c.l.b16 %v2155
    %v2290 = vunpack.c.l.b16 %v2156
    %v2291 = vunpack.c.l.b16 %v2157
    %v2292 = vunpack.c.l.b16 %v2158
    %v2293 = vunpack.c.l.b16 %v2159
    %v2294 = vunpack.c.l.b16 %v2160
    %v2295 = vunpack.c.l.b16 %v2161
    %v2296 = vunpack.c.l.b16 %v2162
    %v2297 = vunpack.c.l.b16 %v2163
    %v2298 = vunpack.c.l.b16 %v2164
    %v2299 = vunpack.c.l.b16 %v2165
    %v2300 = vunpack.c.l.b16 %v2166
    %v2301 = vunpack.c.l.b16 %v2167
    %v2302 = vunpack.c.l.b16 %v2168
    %v2303 = vunpack.c.l.b16 %v2169
    %v2304 = vunpack.c.l.b16 %v2170
    %v2305 = vunpack.c.l.b16 %v2171
    %v2306 = vunpack.c.l.b16 %v2172
    %v2307 = vunpack.c.l.b16 %v2173
    %v2308 = vunpack.c.l.b16 %v2174
    %v2309 = vunpack.c.l.b16 %v2175
    %v2310 = vunpack.c.l.b16 %v2176
    %v2311 = vunpack.c.l.b16 %v2177
    %v2312 = vpack.c.b16 %v2249, %v2248
    %v2313 = vpack.c.b16 %v2251, %v2250
    %v2314 = vpack.c.b16 %v2253, %v2252
    %v2315 = vpack.c.b16 %v2255, %v2254
    %v2316 = vpack.c.b16 %v2257, %v2256
    %v2317 = vpack.c.b16 %v2259, %v2258
    %v2318 = vpack.c.b16 %v2261, %v2260
    %v2319 = vpack.c.b16 %v2263, %v2262
    %v2320 = vpack.c.b16 %v2265, %v2264
    %v2321 = vpack.c.b16 %v2267, %v2266
    %v2322 = vpack.c.b16 %v2269, %v2268
    %v2323 = vpack.c.b16 %v2271, %v2270
    %v2324 = vpack.c.b16 %v2273, %v2272
    %v2325 = vpack.c.b16 %v2275, %v2274
    %v2326 = vpack.c.b16 %v2277, %v2276
    %v2327 = vpack.c.b16 %v2279, %v2278
    %v2328 = vpack.c.b16 %v2281, %v2280
    %v2329 = vpack.c.b16 %v2283, %v2282
    %v2330 = vpack.c.b16 %v2285, %v2284
    %v2331 = vpack.c.b16 %v2287, %v2286
    %v2332 = vpack.c.b16 %v2289, %v2288
    %v2333 = vpack.c.b16 %v2291, %v2290
    %v2334 = vpack.c.b16 %v2293, %v2292
    %v2335 = vpack.c.b16 %v2295, %v2294
    %v2336 = vpack.c.b16 %v2297, %v2296
    %v2337 = vpack.c.b16 %v2299, %v2298
    %v2338 = vpack.c.b16 %v2301, %v2300
    %v2339 = vpack.c.b16 %v2303, %v2302
    %v2340 = vpack.c.b16 %v2305, %v2304
    %v2341 = vpack.c.b16 %v2307, %v2306
    %v2342 = vpack.c.b16 %v2309, %v2308
    %v2343 = vpack.c.b16 %v2311, %v2310
    %2376 = vmatprep.subr.bf16.mxu0 0
    %2377 = vmatpush1.bf16.msra.mxu0 %v2319
    %2378 = vmatprep.subr.bf16.mxu0 0
    %2379 = vmatpush1.bf16.msra.mxu0 %v2318
    %2380 = vmatprep.subr.bf16.mxu0 0
    %2381 = vmatpush1.bf16.msra.mxu0 %v2317
    %2382 = vmatprep.subr.bf16.mxu0 0
    %2383 = vmatpush1.bf16.msra.mxu0 %v2316
    %2384 = vmatprep.subr.bf16.mxu0 0
    %2385 = vmatpush1.bf16.msra.mxu0 %v2315
    %2386 = vmatprep.subr.bf16.mxu0 0
    %2387 = vmatpush1.bf16.msra.mxu0 %v2314
    %2388 = vmatprep.subr.bf16.mxu0 0
    %2389 = vmatpush1.bf16.msra.mxu0 %v2313
    %2390 = vmatprep.subr.bf16.mxu0 0
    %2391 = vmatpush1.bf16.msra.mxu0 %v2312
    %2392 = vmatprep.subr.bf16.mxu0 0
    %2393 = vmatpush2.bf16.msra.mxu0 %v2327
    %2394 = vmatprep.subr.bf16.mxu0 0
    %2395 = vmatpush2.bf16.msra.mxu0 %v2326
    %2396 = vmatprep.subr.bf16.mxu0 0
    %2397 = vmatpush2.bf16.msra.mxu0 %v2325
    %2398 = vmatprep.subr.bf16.mxu0 0
    %2399 = vmatpush2.bf16.msra.mxu0 %v2324
    %2400 = vmatprep.subr.bf16.mxu0 0
    %2401 = vmatpush2.bf16.msra.mxu0 %v2323
    %2402 = vmatprep.subr.bf16.mxu0 0
    %2403 = vmatpush2.bf16.msra.mxu0 %v2322
    %2404 = vmatprep.subr.bf16.mxu0 0
    %2405 = vmatpush2.bf16.msra.mxu0 %v2321
    %2406 = vmatprep.subr.bf16.mxu0 0
    %2407 = vmatpush2.bf16.msra.mxu0 %v2320
    %2408 = vmatprep.mubr.bf16.mxu0 %v2082
    %2409 = vmatmul.mubr.bf16.gmra.mxu0 %v2081
    %v2410 = vpop.f32.mrf.mxu0
    %v2411 = vadd.f32 %v2182, %v2410
    %v2412 = vpop.f32.mrf.mxu0
    %v2413 = vpop.f32.mrf.mxu0
    %v2414 = vadd.f32 %v2182, %v2413
    %v2415 = vpop.f32.mrf.mxu0
    %2416 = vmatprep.mubr.bf16.mxu0 %v2086
    %2417 = vmatmul.mubr.bf16.gmra.mxu0 %v2085
    %v2418 = vpop.f32.mrf.mxu0
    %v2419 = vadd.f32 %v2182, %v2418
    %v2420 = vpop.f32.mrf.mxu0
    %v2421 = vpop.f32.mrf.mxu0
    %v2422 = vadd.f32 %v2182, %v2421
    %v2423 = vpop.f32.mrf.mxu0
    %2424 = vmatprep.mubr.bf16.mxu0 %v2090
    %2425 = vmatmul.mubr.bf16.gmra.mxu0 %v2089
    %v2426 = vpop.f32.mrf.mxu0
    %v2427 = vadd.f32 %v2182, %v2426
    %v2428 = vpop.f32.mrf.mxu0
    %v2429 = vpop.f32.mrf.mxu0
    %v2430 = vadd.f32 %v2182, %v2429
    %v2431 = vpop.f32.mrf.mxu0
    %2432 = vmatprep.mubr.bf16.mxu0 %v2094
    %2433 = vmatmul.mubr.bf16.gmra.mxu0 %v2093
    %v2434 = vpop.f32.mrf.mxu0
    %v2435 = vadd.f32 %v2182, %v2434
    %v2436 = vpop.f32.mrf.mxu0
    %v2437 = vpop.f32.mrf.mxu0
    %v2438 = vadd.f32 %v2182, %v2437
    %v2439 = vpop.f32.mrf.mxu0
    %2440 = vmatprep.mubr.bf16.mxu0 %v2098
    %2441 = vmatmul.mubr.bf16.gmra.mxu0 %v2097
    %v2442 = vpop.f32.mrf.mxu0
    %v2443 = vadd.f32 %v2182, %v2442
    %v2444 = vpop.f32.mrf.mxu0
    %v2445 = vpop.f32.mrf.mxu0
    %v2446 = vadd.f32 %v2182, %v2445
    %v2447 = vpop.f32.mrf.mxu0
    %2448 = vmatprep.mubr.bf16.mxu0 %v2102
    %2449 = vmatmul.mubr.bf16.gmra.mxu0 %v2101
    %v2450 = vpop.f32.mrf.mxu0
    %v2451 = vadd.f32 %v2182, %v2450
    %v2452 = vpop.f32.mrf.mxu0
    %v2453 = vpop.f32.mrf.mxu0
    %v2454 = vadd.f32 %v2182, %v2453
    %v2455 = vpop.f32.mrf.mxu0
    %2456 = vmatprep.mubr.bf16.mxu0 %v2106
    %2457 = vmatmul.mubr.bf16.gmra.mxu0 %v2105
    %v2458 = vpop.f32.mrf.mxu0
    %v2459 = vadd.f32 %v2182, %v2458
    %v2460 = vpop.f32.mrf.mxu0
    %v2461 = vpop.f32.mrf.mxu0
    %v2462 = vadd.f32 %v2182, %v2461
    %v2463 = vpop.f32.mrf.mxu0
    %2464 = vmatprep.mubr.bf16.mxu0 %v2110
    %2465 = vmatmul.mubr.bf16.gmra.mxu0 %v2109
    %v2466 = vpop.f32.mrf.mxu0
    %v2467 = vadd.f32 %v2182, %v2466
    %v2468 = vpop.f32.mrf.mxu0
    %v2469 = vpop.f32.mrf.mxu0
    %v2470 = vadd.f32 %v2182, %v2469
    %v2471 = vpop.f32.mrf.mxu0
    %2472 = vdwg.mxu0
    %2473 = vmatprep.subr.bf16.mxu0 0
    %2474 = vmatpush1.bf16.msra.mxu0 %v2335
    %2475 = vmatprep.subr.bf16.mxu0 0
    %2476 = vmatpush1.bf16.msra.mxu0 %v2334
    %2477 = vmatprep.subr.bf16.mxu0 0
    %2478 = vmatpush1.bf16.msra.mxu0 %v2333
    %2479 = vmatprep.subr.bf16.mxu0 0
    %2480 = vmatpush1.bf16.msra.mxu0 %v2332
    %2481 = vmatprep.subr.bf16.mxu0 0
    %2482 = vmatpush1.bf16.msra.mxu0 %v2331
    %2483 = vmatprep.subr.bf16.mxu0 0
    %2484 = vmatpush1.bf16.msra.mxu0 %v2330
    %2485 = vmatprep.subr.bf16.mxu0 0
    %2486 = vmatpush1.bf16.msra.mxu0 %v2329
    %2487 = vmatprep.subr.bf16.mxu0 0
    %2488 = vmatpush1.bf16.msra.mxu0 %v2328
    %2489 = vmatprep.subr.bf16.mxu0 0
    %2490 = vmatpush2.bf16.msra.mxu0 %v2343
    %2491 = vmatprep.subr.bf16.mxu0 0
    %2492 = vmatpush2.bf16.msra.mxu0 %v2342
    %2493 = vmatprep.subr.bf16.mxu0 0
    %2494 = vmatpush2.bf16.msra.mxu0 %v2341
    %2495 = vmatprep.subr.bf16.mxu0 0
    %2496 = vmatpush2.bf16.msra.mxu0 %v2340
    %2497 = vmatprep.subr.bf16.mxu0 0
    %2498 = vmatpush2.bf16.msra.mxu0 %v2339
    %2499 = vmatprep.subr.bf16.mxu0 0
    %2500 = vmatpush2.bf16.msra.mxu0 %v2338
    %2501 = vmatprep.subr.bf16.mxu0 0
    %2502 = vmatpush2.bf16.msra.mxu0 %v2337
    %2503 = vmatprep.subr.bf16.mxu0 0
    %2504 = vmatpush2.bf16.msra.mxu0 %v2336
    %2505 = vmatprep.mubr.bf16.mxu0 %v2084
    %2506 = vmatmul.mubr.bf16.gmra.mxu0 %v2083
    %v2507 = vpop.f32.mrf.mxu0
    %v2508 = vadd.f32 %v2411, %v2507
    %v2509 = vpop.f32.mrf.mxu0
    %v2510 = vpop.f32.mrf.mxu0
    %v2511 = vadd.f32 %v2414, %v2510
    %v2512 = vpop.f32.mrf.mxu0
    %2513 = vmatprep.mubr.bf16.mxu0 %v2088
    %2514 = vmatmul.mubr.bf16.gmra.mxu0 %v2087
    %v2515 = vpop.f32.mrf.mxu0
    %v2516 = vadd.f32 %v2419, %v2515
    %v2517 = vpop.f32.mrf.mxu0
    %v2518 = vpop.f32.mrf.mxu0
    %v2519 = vadd.f32 %v2422, %v2518
    %v2520 = vpop.f32.mrf.mxu0
    %2521 = vmatprep.mubr.bf16.mxu0 %v2092
    %2522 = vmatmul.mubr.bf16.gmra.mxu0 %v2091
    %v2523 = vpop.f32.mrf.mxu0
    %v2524 = vadd.f32 %v2427, %v2523
    %v2525 = vpop.f32.mrf.mxu0
    %v2526 = vpop.f32.mrf.mxu0
    %v2527 = vadd.f32 %v2430, %v2526
    %v2528 = vpop.f32.mrf.mxu0
    %2529 = vmatprep.mubr.bf16.mxu0 %v2096
    %2530 = vmatmul.mubr.bf16.gmra.mxu0 %v2095
    %v2531 = vpop.f32.mrf.mxu0
    %v2532 = vadd.f32 %v2435, %v2531
    %v2533 = vpop.f32.mrf.mxu0
    %v2534 = vpop.f32.mrf.mxu0
    %v2535 = vadd.f32 %v2438, %v2534
    %v2536 = vpop.f32.mrf.mxu0
    %2537 = vmatprep.mubr.bf16.mxu0 %v2100
    %2538 = vmatmul.mubr.bf16.gmra.mxu0 %v2099
    %v2539 = vpop.f32.mrf.mxu0
    %v2540 = vadd.f32 %v2443, %v2539
    %v2541 = vpop.f32.mrf.mxu0
    %v2542 = vpop.f32.mrf.mxu0
    %v2543 = vadd.f32 %v2446, %v2542
    %v2544 = vpop.f32.mrf.mxu0
    %2545 = vmatprep.mubr.bf16.mxu0 %v2104
    %2546 = vmatmul.mubr.bf16.gmra.mxu0 %v2103
    %v2547 = vpop.f32.mrf.mxu0
    %v2548 = vadd.f32 %v2451, %v2547
    %v2549 = vpop.f32.mrf.mxu0
    %v2550 = vpop.f32.mrf.mxu0
    %v2551 = vadd.f32 %v2454, %v2550
    %v2552 = vpop.f32.mrf.mxu0
    %2553 = vmatprep.mubr.bf16.mxu0 %v2108
    %2554 = vmatmul.mubr.bf16.gmra.mxu0 %v2107
    %v2555 = vpop.f32.mrf.mxu0
    %v2556 = vadd.f32 %v2459, %v2555
    %v2557 = vpop.f32.mrf.mxu0
    %v2558 = vpop.f32.mrf.mxu0
    %v2559 = vadd.f32 %v2462, %v2558
    %v2560 = vpop.f32.mrf.mxu0
    %2561 = vmatprep.mubr.bf16.mxu0 %v2112
    %2562 = vmatmul.mubr.bf16.gmra.mxu0 %v2111
    %v2563 = vpop.f32.mrf.mxu0
    %v2564 = vadd.f32 %v2467, %v2563
    %v2565 = vpop.f32.mrf.mxu0
    %v2566 = vpop.f32.mrf.mxu0
    %v2567 = vadd.f32 %v2470, %v2566
    %v2568 = vpop.f32.mrf.mxu0
    %2569 = vdwg.mxu0
    %v2570 = vmax.f32 %v2508, 0.0
    %v2571 = vmax.f32 %v2511, 0.0
    %v2572 = vmax.f32 %v2516, 0.0
    %v2573 = vmax.f32 %v2519, 0.0
    %v2574 = vmax.f32 %v2524, 0.0
    %v2575 = vmax.f32 %v2527, 0.0
    %v2576 = vmax.f32 %v2532, 0.0
    %v2577 = vmax.f32 %v2535, 0.0
    %v2578 = vmax.f32 %v2540, 0.0
    %v2579 = vmax.f32 %v2543, 0.0
    %v2580 = vmax.f32 %v2548, 0.0
    %v2581 = vmax.f32 %v2551, 0.0
    %v2582 = vmax.f32 %v2556, 0.0
    %v2583 = vmax.f32 %v2559, 0.0
    %v2584 = vmax.f32 %v2564, 0.0
    %v2585 = vmax.f32 %v2567, 0.0
    %v2586 = vpack.c.bf16 %v2571, %v2570
    %v2587 = vpack.c.bf16 %v2573, %v2572
    %v2588 = vpack.c.bf16 %v2575, %v2574
    %v2589 = vpack.c.bf16 %v2577, %v2576
    %v2590 = vpack.c.bf16 %v2579, %v2578
    %v2591 = vpack.c.bf16 %v2581, %v2580
    %v2592 = vpack.c.bf16 %v2583, %v2582
    %v2593 = vpack.c.bf16 %v2585, %v2584
    %v2594 = vld [vmem:[%s6 + $0xa] sm:$0x1]
    %v2595 = vld [vmem:[%s5] sm:$0xf]
    %v2596 = vld [vmem:[%s5 + $0x4] sm:$0xf]
    %v2597 = vld [vmem:[%s5 + $0x8] sm:$0xf]
    %v2598 = vld [vmem:[%s5 + $0xc] sm:$0xf]
    %v2599 = vld [vmem:[%s5 + $0x10] sm:$0xf]
    %v2600 = vld [vmem:[%s5 + $0x14] sm:$0xf]
    %v2601 = vld [vmem:[%s5 + $0x18] sm:$0xf]
    %v2602 = vld [vmem:[%s5 + $0x1c] sm:$0xf]
    %v2603 = vld [vmem:[%s5 + $0x20] sm:$0xf]
    %v2604 = vld [vmem:[%s5 + $0x24] sm:$0xf]
    %v2605 = vld [vmem:[%s5 + $0x28] sm:$0xf]
    %v2606 = vld [vmem:[%s5 + $0x2c] sm:$0xf]
    %v2607 = vld [vmem:[%s5 + $0x30] sm:$0xf]
    %v2608 = vld [vmem:[%s5 + $0x34] sm:$0xf]
    %v2609 = vld [vmem:[%s5 + $0x38] sm:$0xf]
    %v2610 = vld [vmem:[%s5 + $0x3c] sm:$0xf]
    %v2612 = vlaneseq
    %v2613 = vshrl.u32 %v2612, 7
    %v2614 = vsub.s32 0, %v2613
    %v2615 = vrot.slane %v2594, %v2614
    %v2633 = vunpack.c.l.b16 %v2595
    %v2634 = vunpack.c.l.b16 %v2596
    %v2635 = vunpack.c.l.b16 %v2597
    %v2636 = vunpack.c.l.b16 %v2598
    %v2637 = vunpack.c.l.b16 %v2599
    %v2638 = vunpack.c.l.b16 %v2600
    %v2639 = vunpack.c.l.b16 %v2601
    %v2640 = vunpack.c.l.b16 %v2602
    %v2641 = vunpack.c.l.b16 %v2603
    %v2642 = vunpack.c.l.b16 %v2604
    %v2643 = vunpack.c.l.b16 %v2605
    %v2644 = vunpack.c.l.b16 %v2606
    %v2645 = vunpack.c.l.b16 %v2607
    %v2646 = vunpack.c.l.b16 %v2608
    %v2647 = vunpack.c.l.b16 %v2609
    %v2648 = vunpack.c.l.b16 %v2610
    %v2649 = vpack.c.b16 %v2634, %v2633
    %v2650 = vpack.c.b16 %v2636, %v2635
    %v2651 = vpack.c.b16 %v2638, %v2637
    %v2652 = vpack.c.b16 %v2640, %v2639
    %v2653 = vpack.c.b16 %v2642, %v2641
    %v2654 = vpack.c.b16 %v2644, %v2643
    %v2655 = vpack.c.b16 %v2646, %v2645
    %v2656 = vpack.c.b16 %v2648, %v2647
    %2665 = vmatprep.subr.bf16.mxu0 0
    %2666 = vmatpush1.bf16.msra.mxu0 %v2656
    %2667 = vmatprep.subr.bf16.mxu0 0
    %2668 = vmatpush1.bf16.msra.mxu0 %v2655
    %2669 = vmatprep.subr.bf16.mxu0 0
    %2670 = vmatpush1.bf16.msra.mxu0 %v2654
    %2671 = vmatprep.subr.bf16.mxu0 0
    %2672 = vmatpush1.bf16.msra.mxu0 %v2653
    %2673 = vmatprep.subr.bf16.mxu0 0
    %2674 = vmatpush1.bf16.msra.mxu0 %v2652
    %2675 = vmatprep.subr.bf16.mxu0 0
    %2676 = vmatpush1.bf16.msra.mxu0 %v2651
    %2677 = vmatprep.subr.bf16.mxu0 0
    %2678 = vmatpush1.bf16.msra.mxu0 %v2650
    %2679 = vmatprep.subr.bf16.mxu0 0
    %2680 = vmatpush1.bf16.msra.mxu0 %v2649
    %2681 = vmatprep.subr.bf16.mxu0 0
    %2682 = vmatpush2.bf16.msra.mxu0 0
    %2683 = vmatprep.subr.bf16.mxu0 0
    %2684 = vmatpush2.bf16.msra.mxu0 0
    %2685 = vmatprep.subr.bf16.mxu0 0
    %2686 = vmatpush2.bf16.msra.mxu0 0
    %2687 = vmatprep.subr.bf16.mxu0 0
    %2688 = vmatpush2.bf16.msra.mxu0 0
    %2689 = vmatprep.subr.bf16.mxu0 0
    %2690 = vmatpush2.bf16.msra.mxu0 0
    %2691 = vmatprep.subr.bf16.mxu0 0
    %2692 = vmatpush2.bf16.msra.mxu0 0
    %2693 = vmatprep.subr.bf16.mxu0 0
    %2694 = vmatpush2.bf16.msra.mxu0 0
    %2695 = vmatprep.subr.bf16.mxu0 0
    %2696 = vmatpush2.bf16.msra.mxu0 0
    %2697 = vmatprep.mubr.bf16.mxu0 0
    %2698 = vmatmul.mubr.bf16.gmra.mxu0 %v2586
    %v2699 = vpop.f32.mrf.mxu0
    %v2700 = vadd.f32 %v2615, %v2699
    %v2701 = vpop.f32.mrf.mxu0
    %v2702 = vpop.f32.mrf.mxu0
    %v2703 = vadd.f32 %v2615, %v2702
    %v2704 = vpop.f32.mrf.mxu0
    %2705 = vmatprep.mubr.bf16.mxu0 0
    %2706 = vmatmul.mubr.bf16.gmra.mxu0 %v2587
    %v2707 = vpop.f32.mrf.mxu0
    %v2708 = vadd.f32 %v2615, %v2707
    %v2709 = vpop.f32.mrf.mxu0
    %v2710 = vpop.f32.mrf.mxu0
    %v2711 = vadd.f32 %v2615, %v2710
    %v2712 = vpop.f32.mrf.mxu0
    %2713 = vmatprep.mubr.bf16.mxu0 0
    %2714 = vmatmul.mubr.bf16.gmra.mxu0 %v2588
    %v2715 = vpop.f32.mrf.mxu0
    %v2716 = vadd.f32 %v2615, %v2715
    %v2717 = vpop.f32.mrf.mxu0
    %v2718 = vpop.f32.mrf.mxu0
    %v2719 = vadd.f32 %v2615, %v2718
    %v2720 = vpop.f32.mrf.mxu0
    %2721 = vmatprep.mubr.bf16.mxu0 0
    %2722 = vmatmul.mubr.bf16.gmra.mxu0 %v2589
    %v2723 = vpop.f32.mrf.mxu0
    %v2724 = vadd.f32 %v2615, %v2723
    %v2725 = vpop.f32.mrf.mxu0
    %v2726 = vpop.f32.mrf.mxu0
    %v2727 = vadd.f32 %v2615, %v2726
    %v2728 = vpop.f32.mrf.mxu0
    %2729 = vmatprep.mubr.bf16.mxu0 0
    %2730 = vmatmul.mubr.bf16.gmra.mxu0 %v2590
    %v2731 = vpop.f32.mrf.mxu0
    %v2732 = vadd.f32 %v2615, %v2731
    %v2733 = vpop.f32.mrf.mxu0
    %v2734 = vpop.f32.mrf.mxu0
    %v2735 = vadd.f32 %v2615, %v2734
    %v2736 = vpop.f32.mrf.mxu0
    %2737 = vmatprep.mubr.bf16.mxu0 0
    %2738 = vmatmul.mubr.bf16.gmra.mxu0 %v2591
    %v2739 = vpop.f32.mrf.mxu0
    %v2740 = vadd.f32 %v2615, %v2739
    %v2741 = vpop.f32.mrf.mxu0
    %v2742 = vpop.f32.mrf.mxu0
    %v2743 = vadd.f32 %v2615, %v2742
    %v2744 = vpop.f32.mrf.mxu0
    %2745 = vmatprep.mubr.bf16.mxu0 0
    %2746 = vmatmul.mubr.bf16.gmra.mxu0 %v2592
    %v2747 = vpop.f32.mrf.mxu0
    %v2748 = vadd.f32 %v2615, %v2747
    %v2749 = vpop.f32.mrf.mxu0
    %v2750 = vpop.f32.mrf.mxu0
    %v2751 = vadd.f32 %v2615, %v2750
    %v2752 = vpop.f32.mrf.mxu0
    %2753 = vmatprep.mubr.bf16.mxu0 0
    %2754 = vmatmul.mubr.bf16.gmra.mxu0 %v2593
    %v2755 = vpop.f32.mrf.mxu0
    %v2756 = vadd.f32 %v2615, %v2755
    %v2757 = vpop.f32.mrf.mxu0
    %v2758 = vpop.f32.mrf.mxu0
    %v2759 = vadd.f32 %v2615, %v2758
    %v2760 = vpop.f32.mrf.mxu0
    %2761 = vdwg.mxu0
    %v2762 = vmax.f32 %v2700, 0.0
    %v2763 = vmax.f32 %v2703, 0.0
    %v2764 = vmax.f32 %v2708, 0.0
    %v2765 = vmax.f32 %v2711, 0.0
    %v2766 = vmax.f32 %v2716, 0.0
    %v2767 = vmax.f32 %v2719, 0.0
    %v2768 = vmax.f32 %v2724, 0.0
    %v2769 = vmax.f32 %v2727, 0.0
    %v2770 = vmax.f32 %v2732, 0.0
    %v2771 = vmax.f32 %v2735, 0.0
    %v2772 = vmax.f32 %v2740, 0.0
    %v2773 = vmax.f32 %v2743, 0.0
    %v2774 = vmax.f32 %v2748, 0.0
    %v2775 = vmax.f32 %v2751, 0.0
    %v2776 = vmax.f32 %v2756, 0.0
    %v2777 = vmax.f32 %v2759, 0.0
    %2778 = vst [vmem:[%s7] sm:$0xff] %v2762
    %2779 = vst [vmem:[%s7 + $0x8] sm:$0xff] %v2763
    %2780 = vst [vmem:[%s7 + $0x10] sm:$0xff] %v2764
    %2781 = vst [vmem:[%s7 + $0x18] sm:$0xff] %v2765
    %2782 = vst [vmem:[%s7 + $0x20] sm:$0xff] %v2766
    %2783 = vst [vmem:[%s7 + $0x28] sm:$0xff] %v2767
    %2784 = vst [vmem:[%s7 + $0x30] sm:$0xff] %v2768
    %2785 = vst [vmem:[%s7 + $0x38] sm:$0xff] %v2769
    %2786 = vst [vmem:[%s7 + $0x40] sm:$0xff] %v2770
    %2787 = vst [vmem:[%s7 + $0x48] sm:$0xff] %v2771
    %2788 = vst [vmem:[%s7 + $0x50] sm:$0xff] %v2772
    %2789 = vst [vmem:[%s7 + $0x58] sm:$0xff] %v2773
    %2790 = vst [vmem:[%s7 + $0x60] sm:$0xff] %v2774
    %2791 = vst [vmem:[%s7 + $0x68] sm:$0xff] %v2775
    %2792 = vst [vmem:[%s7 + $0x70] sm:$0xff] %v2776
    %2793 = vst [vmem:[%s7 + $0x78] sm:$0xff] %v2777
    // Predicated region
    $region46: #{qnetwork2_forward.1} parent=1 // pred_check
      _
    $region47: #{qnetwork2_forward.1} parent=1 // pred_check_branch
      %2795 = sbr.rel (0) target = $region49
    $region48: #{qnetwork2_forward.1} parent=1 // pred_region
      _
    $region49: #{qnetwork2_forward.1} parent=1 // pred_fallthru
      _
    // Predicated region
    $region50: #{qnetwork2_forward.1} parent=1 // pred_check
      _
    $region51: #{qnetwork2_forward.1} parent=1 // pred_check_branch
      %2797 = sbr.rel (0) target = $region53
    $region52: #{qnetwork2_forward.1} parent=1 // pred_region
      _
    $region53: #{qnetwork2_forward.1} parent=1 // pred_fallthru
      _
    %2798 = vsyncpa [#allocation3], 1
    %2799 = vsyncpa [#allocation5], 1
    %2800 = vsyncpa [#allocation8], 1

</llo_original>
